<compile_context>
chip_gen: v6e
topology: v6e:2x2x1
jax: 0.10.0
libtpu: 0.0.40
codegen_flags: <defaults>
</compile_context>

<pallas_src>
import math
import functools

import jax
import jax.numpy as jnp
from jax.experimental import pallas as pl
from jax.experimental.pallas import tpu as pltpu


def _cdiv(a, b):
    return -(-a // b)


def _padded_bytes(shape, dtype):
    """Physical VMEM footprint of a block: last dim rounds up to 128 lanes,
    second-to-last to the dtype's sublane tile (8 f32 / 16 bf16 / 32 int8)."""
    itemsize = jnp.dtype(dtype).itemsize
    sublane = {4: 8, 2: 16, 1: 32}.get(itemsize, 8)
    s = list(shape)
    if len(s) >= 1:
        s[-1] = 128 * _cdiv(s[-1], 128)
    if len(s) >= 2:
        s[-2] = sublane * _cdiv(s[-2], sublane)
    n = 1
    for d in s:
        n *= d
    return n * itemsize


# ----------------------------- Pallas kernel ------------------------------- #
def _conv_block_kernel(x_ref, w_ref, b_ref, o_ref, patch_ref, *,
                       KH, KW, sH, sW, th, W_out, C_in, act):
    # x_ref:     (1, slab_h, W_pad, C_in)   bf16 haloed input slab
    # w_ref:     (KH*KW*C_in, C_out_p)      bf16 folded weights
    # b_ref:     (1, C_out_p)               f32
    # o_ref:     (1, th*W_out, C_out_p)     output tile
    # patch_ref: (th*W_out, KH*KW*C_in)     bf16 VMEM scratch (im2col patch)
    xv = x_ref[0]                                     # (slab_h, W_pad, C_in)
    m_tile = th * W_out

    # Fused im2col: each (kh, kw) shifted window of the slab is written into
    # its own lane band of the patch scratch.  The (th, W_out, C_in) ->
    # (th*W_out, C_in) reshape only collapses leading dims (layout-preserving
    # when W_out is a sublane multiple).  Static Python loops -> fully unrolled.
    for kh in range(KH):
        for kw in range(KW):
            win = jax.lax.slice(
                xv,
                (kh, kw, 0),
                (kh + (th - 1) * sH + 1, kw + (W_out - 1) * sW + 1, C_in),
                (sH, sW, 1),
            )                                         # (th, W_out, C_in)
            j = (kh * KW + kw) * C_in
            patch_ref[:, j:j + C_in] = win.reshape(m_tile, C_in)

    # Single MXU pass: KH*KW*C_in folded into the contraction depth.
    acc = jnp.dot(patch_ref[...], w_ref[...],
                  preferred_element_type=jnp.float32)
    acc = acc + b_ref[...].astype(jnp.float32)
    if act == "relu":
        acc = jnp.maximum(acc, 0.0)
    elif act == "gelu":
        # nn.GELU() default: exact erf-based GELU (module semantics).
        acc = 0.5 * acc * (1.0 + jax.lax.erf(acc * (1.0 / math.sqrt(2.0))))
    elif act is not None:
        raise ValueError(f"unsupported activation: {act}")
    o_ref[0] = acc.astype(o_ref.dtype)


# ------------------------------ Wrapper ------------------------------------ #
def conv2d_block(x, weight, bias, stride, padding, act=None, *,
                 compute_dtype=jnp.bfloat16):
    """Equivalent of Conv2dBlock.forward.

    x:      (N, C_in, H, W)         (NCHW, like PyTorch)
    weight: (C_out, C_in, KH, KW)
    bias:   (C_out,)
    returns (N, C_out, H_out, W_out)
    """
    if isinstance(stride, int):
        stride = (stride, stride)
    if isinstance(padding, int):
        padding = (padding, padding)
    sH, sW = stride
    pH, pW = padding
    if act not in (None, "relu", "gelu"):
        raise ValueError(f"unsupported activation: {act}")

    N, C_in, H, W = x.shape
    C_out, _, KH, KW = weight.shape
    H_out = (H + 2 * pH - KH) // sH + 1
    W_out = (W + 2 * pW - KW) // sW + 1
    W_padded = W + 2 * pW
    K = KH * KW * C_in

    # Output channels: only lane-pad when C_out is already large.  Padding a
    # small C_out up to 128 wastes ~16x MXU FLOPs / VMEM / writeback.
    C_out_p = 128 * _cdiv(C_out, 128) if C_out >= 128 else C_out

    # ---- generation-aware VMEM budget with a padding-aware byte model ------
    try:
        vmem_cap = int(pltpu.get_tpu_info().vmem_capacity_bytes)
    except Exception:
        vmem_cap = 64 * 2 ** 20            # conservative: v7x per-core VMEM
    budget = int(0.55 * vmem_cap)

    out_dtype = x.dtype

    def _tile_bytes(th_):
        slab_h_ = (th_ - 1) * sH + KH
        m = th_ * W_out
        in_blk = _padded_bytes((1, slab_h_, W_padded, C_in), compute_dtype)
        out_blk = _padded_bytes((1, m, C_out_p), out_dtype)
        w_blk = _padded_bytes((K, C_out_p), compute_dtype)
        b_blk = _padded_bytes((1, C_out_p), jnp.float32)
        patch = _padded_bytes((m, K), compute_dtype)
        acc = _padded_bytes((m, C_out_p), jnp.float32)
        # in/out/w/b are double-buffered by the pipeline; patch scratch and the
        # live f32 accumulator are single instances.
        return 2 * (in_blk + out_blk + w_blk + b_blk) + patch + acc

    # Row tile: target ~2048 output rows of M per grid step, shrink only while
    # the padded footprint exceeds the budget.
    th = max(1, min(H_out, max(1, 2048 // max(1, W_out))))
    while th > 1 and _tile_bytes(th) > budget:
        th = _cdiv(th, 2)
    n_row_tiles = _cdiv(H_out, th)
    # Keep >= 2 grid steps when possible so both v7x TensorCores get work.
    if N * n_row_tiles < 2 and H_out >= 2:
        th = _cdiv(H_out, 2)
        n_row_tiles = _cdiv(H_out, th)

    H_out_pad = n_row_tiles * th
    slab_h = (th - 1) * sH + KH
    H_needed = (H_out_pad - 1) * sH + KH
    extra_bottom = max(0, H_needed - (H + 2 * pH))

    # ---- glue: NCHW -> NHWC, bf16 cast, halo pad ---------------------------
    x_nhwc = jnp.transpose(x, (0, 2, 3, 1)).astype(compute_dtype)
    x_pad = jnp.pad(x_nhwc,
                    ((0, 0), (pH, pH + extra_bottom), (pW, pW), (0, 0)))
    if n_row_tiles == 1:
        # Whole image in one row tile: no overlapping-slab HBM materialization.
        slabs = x_pad[:, :slab_h]                       # (N, slab_h, Wp, C)
    else:
        # TODO(synk): express the overlapping halo window with element-offset
        # block dims / a manual make_async_copy instead of re-materializing
        # the overlapping row slabs in HBM.
        slabs = jnp.stack(
            [x_pad[:, r * th * sH: r * th * sH + slab_h]
             for r in range(n_row_tiles)], axis=1)
        slabs = slabs.reshape(N * n_row_tiles, slab_h, W_padded, C_in)
    G = N * n_row_tiles

    # Weights folded for the single-dot contraction:
    # (C_out, C_in, KH, KW) -> (KH, KW, C_in, C_out) -> (KH*KW*C_in, C_out_p).
    w2d = jnp.transpose(weight, (2, 3, 1, 0)).reshape(K, C_out)
    w2d = jnp.pad(w2d, ((0, 0), (0, C_out_p - C_out))).astype(compute_dtype)
    b2 = jnp.pad(bias, (0, C_out_p - C_out)).reshape(1, C_out_p)
    b2 = b2.astype(jnp.float32)

    m_tile = th * W_out
    tile_b = _tile_bytes(th)
    vmem_limit = int(min(int(0.9 * vmem_cap),
                         max(32 * 2 ** 20, int(1.5 * tile_b))))

    kernel = functools.partial(
        _conv_block_kernel,
        KH=KH, KW=KW, sH=sH, sW=sW, th=th, W_out=W_out, C_in=C_in, act=act)

    out = pl.pallas_call(
        kernel,
        out_shape=jax.ShapeDtypeStruct((G, m_tile, C_out_p), out_dtype),
        grid_spec=pltpu.PrefetchScalarGridSpec(
            num_scalar_prefetch=0,
            grid=(G,),
            in_specs=[
                pl.BlockSpec((1, slab_h, W_padded, C_in),
                             lambda g: (g, 0, 0, 0)),
                pl.BlockSpec((K, C_out_p), lambda g: (0, 0)),
                pl.BlockSpec((1, C_out_p), lambda g: (0, 0)),
            ],
            out_specs=pl.BlockSpec((1, m_tile, C_out_p),
                                   lambda g: (g, 0, 0)),
            scratch_shapes=[pltpu.VMEM((m_tile, K), compute_dtype)],
        ),
        compiler_params=pltpu.CompilerParams(
            dimension_semantics=("parallel",),
            vmem_limit_bytes=vmem_limit,
        ),
    )(slabs, w2d, b2)

    out = out.reshape(N, H_out_pad, W_out, C_out_p)
    out = out[:, :H_out, :, :C_out]
    return jnp.transpose(out, (0, 3, 1, 2))                 # back to NCHW


# ------------------------------ Reference ----------------------------------- #
def _reference(x, weight, bias, stride, padding, act):
    if isinstance(stride, int):
        stride = (stride, stride)
    if isinstance(padding, int):
        padding = (padding, padding)
    y = jax.lax.conv_general_dilated(
        x, weight,
        window_strides=stride,
        padding=[(padding[0], padding[0]), (padding[1], padding[1])],
        dimension_numbers=("NCHW", "OIHW", "NCHW"),
    ) + bias.reshape(1, -1, 1, 1)
    if act == "relu":
        y = jax.nn.relu(y)
    elif act == "gelu":
        y = jax.nn.gelu(y, approximate=False)
    return y


if __name__ == "__main__":
    # Module config: Conv2dBlock(in_dim=4, out_dim=8, kernel_size=3, stride=1,
    #                            padding=1, act='gelu')
    in_dim, out_dim, ksize, stride, padding, act = 4, 8, 3, 1, 1, "gelu"

    key = jax.random.PRNGKey(0)
    kx, kw, kb = jax.random.split(key, 3)
    x = jax.random.normal(kx, (2, in_dim, 16, 16), dtype=jnp.float32)
    fan_in = in_dim * ksize * ksize
    bound = 1.0 / math.sqrt(fan_in)
    weight = jax.random.uniform(
        kw, (out_dim, in_dim, ksize, ksize), jnp.float32, -bound, bound)
    bias = jax.random.uniform(kb, (out_dim,), jnp.float32, -bound, bound)

    y = conv2d_block(x, weight, bias, stride, padding, act)
    y = jax.block_until_ready(y)

    # Tight check: same-precision reference (inputs rounded to bf16, f32 math),
    # which is what the kernel computes (bf16 x bf16 -> f32 accumulate).
    xq = x.astype(jnp.bfloat16).astype(jnp.float32)
    wq = weight.astype(jnp.bfloat16).astype(jnp.float32)
    y_ref_q = _reference(xq, wq, bias, stride, padding, act)
    # Loose sanity check against the full-f32 module semantics.
    y_ref = _reference(x, weight, bias, stride, padding, act)

    assert y.shape == y_ref.shape, (y.shape, y_ref.shape)
    err_q = float(jnp.max(jnp.abs(y - y_ref_q)))
    err_f = float(jnp.max(jnp.abs(y - y_ref)))
    assert err_q < 2e-4, err_q
    assert err_f < 5e-2, err_f

    print("KERNEL_OK")
</pallas_src>

<mosaic_0001>
module attributes {stable_mosaic.version = 11 : i64} {
  func.func @_conv_block_kernel(%arg0: i32, %arg1: memref<1x18x18x4xbf16, #tpu.memory_space<vmem>>, %arg2: memref<36x8xbf16, #tpu.memory_space<vmem>>, %arg3: memref<1x8xf32, #tpu.memory_space<vmem>>, %arg4: memref<1x256x8xf32, #tpu.memory_space<vmem>>, %arg5: memref<256x36xbf16, #tpu.memory_space<vmem>>) attributes {dimension_semantics = [#tpu.dimension_semantics<parallel>], iteration_bounds = array<i64: 2>, scalar_prefetch = 0 : i64, scratch_operands = 1 : i64, tpu.core_type = #tpu.core_type<tc>, window_params = [{transform_indices = @transform_0, window_bounds = array<i64: 1, 18, 18, 4>}, {pipeline_mode = #tpu.pipeline_mode<synchronous>, transform_indices = @transform_1, window_bounds = array<i64: 36, 8>}, {pipeline_mode = #tpu.pipeline_mode<synchronous>, transform_indices = @transform_2, window_bounds = array<i64: 1, 8>}, {transform_indices = @transform_3, window_bounds = array<i64: 1, 256, 8>}]} {
    %c0 = arith.constant 0 : index
    %c0_0 = arith.constant 0 : index
    %c0_1 = arith.constant 0 : index
    %c0_2 = arith.constant 0 : index
    %0 = vector.load %arg1[%c0, %c0_0, %c0_1, %c0_2] : memref<1x18x18x4xbf16, #tpu.memory_space<vmem>>, vector<1x18x18x4xbf16>
    %1 = vector.shape_cast %0 : vector<1x18x18x4xbf16> to vector<18x18x4xbf16>
    %2 = vector.extract_strided_slice %1 {offsets = [0, 0, 0], sizes = [16, 16, 4], strides = [1, 1, 1]} : vector<18x18x4xbf16> to vector<16x16x4xbf16>
    %3 = vector.shape_cast %2 : vector<16x16x4xbf16> to vector<256x4xbf16>
    %c0_3 = arith.constant 0 : index
    %c0_4 = arith.constant 0 : index
    %4 = vector.load %arg5[%c0_3, %c0_4] : memref<256x36xbf16, #tpu.memory_space<vmem>>, vector<256x4xbf16>
    tpu.vector_store %arg5[%c0_3, %c0_4], %3 {strides = array<i32>} : memref<256x36xbf16, #tpu.memory_space<vmem>>, vector<256x4xbf16>,
    %5 = vector.extract_strided_slice %1 {offsets = [0, 1, 0], sizes = [16, 16, 4], strides = [1, 1, 1]} : vector<18x18x4xbf16> to vector<16x16x4xbf16>
    %6 = vector.shape_cast %5 : vector<16x16x4xbf16> to vector<256x4xbf16>
    %c0_5 = arith.constant 0 : index
    %c4 = arith.constant 4 : index
    %7 = vector.load %arg5[%c0_5, %c4] : memref<256x36xbf16, #tpu.memory_space<vmem>>, vector<256x4xbf16>
    tpu.vector_store %arg5[%c0_5, %c4], %6 {strides = array<i32>} : memref<256x36xbf16, #tpu.memory_space<vmem>>, vector<256x4xbf16>,
    %8 = vector.extract_strided_slice %1 {offsets = [0, 2, 0], sizes = [16, 16, 4], strides = [1, 1, 1]} : vector<18x18x4xbf16> to vector<16x16x4xbf16>
    %9 = vector.shape_cast %8 : vector<16x16x4xbf16> to vector<256x4xbf16>
    %c0_6 = arith.constant 0 : index
    %c8 = arith.constant 8 : index
    %10 = vector.load %arg5[%c0_6, %c8] : memref<256x36xbf16, #tpu.memory_space<vmem>>, vector<256x4xbf16>
    tpu.vector_store %arg5[%c0_6, %c8], %9 {strides = array<i32>} : memref<256x36xbf16, #tpu.memory_space<vmem>>, vector<256x4xbf16>,
    %11 = vector.extract_strided_slice %1 {offsets = [1, 0, 0], sizes = [16, 16, 4], strides = [1, 1, 1]} : vector<18x18x4xbf16> to vector<16x16x4xbf16>
    %12 = vector.shape_cast %11 : vector<16x16x4xbf16> to vector<256x4xbf16>
    %c0_7 = arith.constant 0 : index
    %c12 = arith.constant 12 : index
    %13 = vector.load %arg5[%c0_7, %c12] : memref<256x36xbf16, #tpu.memory_space<vmem>>, vector<256x4xbf16>
    tpu.vector_store %arg5[%c0_7, %c12], %12 {strides = array<i32>} : memref<256x36xbf16, #tpu.memory_space<vmem>>, vector<256x4xbf16>,
    %14 = vector.extract_strided_slice %1 {offsets = [1, 1, 0], sizes = [16, 16, 4], strides = [1, 1, 1]} : vector<18x18x4xbf16> to vector<16x16x4xbf16>
    %15 = vector.shape_cast %14 : vector<16x16x4xbf16> to vector<256x4xbf16>
    %c0_8 = arith.constant 0 : index
    %c16 = arith.constant 16 : index
    %16 = vector.load %arg5[%c0_8, %c16] : memref<256x36xbf16, #tpu.memory_space<vmem>>, vector<256x4xbf16>
    tpu.vector_store %arg5[%c0_8, %c16], %15 {strides = array<i32>} : memref<256x36xbf16, #tpu.memory_space<vmem>>, vector<256x4xbf16>,
    %17 = vector.extract_strided_slice %1 {offsets = [1, 2, 0], sizes = [16, 16, 4], strides = [1, 1, 1]} : vector<18x18x4xbf16> to vector<16x16x4xbf16>
    %18 = vector.shape_cast %17 : vector<16x16x4xbf16> to vector<256x4xbf16>
    %c0_9 = arith.constant 0 : index
    %c20 = arith.constant 20 : index
    %19 = vector.load %arg5[%c0_9, %c20] : memref<256x36xbf16, #tpu.memory_space<vmem>>, vector<256x4xbf16>
    tpu.vector_store %arg5[%c0_9, %c20], %18 {strides = array<i32>} : memref<256x36xbf16, #tpu.memory_space<vmem>>, vector<256x4xbf16>,
    %20 = vector.extract_strided_slice %1 {offsets = [2, 0, 0], sizes = [16, 16, 4], strides = [1, 1, 1]} : vector<18x18x4xbf16> to vector<16x16x4xbf16>
    %21 = vector.shape_cast %20 : vector<16x16x4xbf16> to vector<256x4xbf16>
    %c0_10 = arith.constant 0 : index
    %c24 = arith.constant 24 : index
    %22 = vector.load %arg5[%c0_10, %c24] : memref<256x36xbf16, #tpu.memory_space<vmem>>, vector<256x4xbf16>
    tpu.vector_store %arg5[%c0_10, %c24], %21 {strides = array<i32>} : memref<256x36xbf16, #tpu.memory_space<vmem>>, vector<256x4xbf16>,
    %23 = vector.extract_strided_slice %1 {offsets = [2, 1, 0], sizes = [16, 16, 4], strides = [1, 1, 1]} : vector<18x18x4xbf16> to vector<16x16x4xbf16>
    %24 = vector.shape_cast %23 : vector<16x16x4xbf16> to vector<256x4xbf16>
    %c0_11 = arith.constant 0 : index
    %c28 = arith.constant 28 : index
    %25 = vector.load %arg5[%c0_11, %c28] : memref<256x36xbf16, #tpu.memory_space<vmem>>, vector<256x4xbf16>
    tpu.vector_store %arg5[%c0_11, %c28], %24 {strides = array<i32>} : memref<256x36xbf16, #tpu.memory_space<vmem>>, vector<256x4xbf16>,
    %26 = vector.extract_strided_slice %1 {offsets = [2, 2, 0], sizes = [16, 16, 4], strides = [1, 1, 1]} : vector<18x18x4xbf16> to vector<16x16x4xbf16>
    %27 = vector.shape_cast %26 : vector<16x16x4xbf16> to vector<256x4xbf16>
    %c0_12 = arith.constant 0 : index
    %c32 = arith.constant 32 : index
    %28 = vector.load %arg5[%c0_12, %c32] : memref<256x36xbf16, #tpu.memory_space<vmem>>, vector<256x4xbf16>
    tpu.vector_store %arg5[%c0_12, %c32], %27 {strides = array<i32>} : memref<256x36xbf16, #tpu.memory_space<vmem>>, vector<256x4xbf16>,
    %c0_13 = arith.constant 0 : index
    %c0_14 = arith.constant 0 : index
    %29 = vector.load %arg5[%c0_13, %c0_14] : memref<256x36xbf16, #tpu.memory_space<vmem>>, vector<256x36xbf16>
    %c0_15 = arith.constant 0 : index
    %c0_16 = arith.constant 0 : index
    %30 = vector.load %arg2[%c0_15, %c0_16] : memref<36x8xbf16, #tpu.memory_space<vmem>>, vector<36x8xbf16>
    %cst = arith.constant dense<0.000000e+00> : vector<256x8xf32>
    %31 = tpu.matmul %29, %30, %cst {dimension_numbers = #tpu.dot_dimension_numbers<[1], [0], [0], [1], [0, 0, 1, 1], [], []>} : vector<256x36xbf16>, vector<36x8xbf16>, vector<256x8xf32> -> vector<256x8xf32>
    %c0_17 = arith.constant 0 : index
    %c0_18 = arith.constant 0 : index
    %32 = vector.load %arg3[%c0_17, %c0_18] : memref<1x8xf32, #tpu.memory_space<vmem>>, vector<1x8xf32>
    %33 = vector.broadcast %32 : vector<1x8xf32> to vector<256x8xf32>
    %34 = arith.addf %31, %33 : vector<256x8xf32>
    %cst_19 = arith.constant 5.000000e-01 : f32
    %35 = vector.broadcast %cst_19 : f32 to vector<256x8xf32>
    %36 = arith.mulf %35, %34 : vector<256x8xf32>
    %cst_20 = arith.constant 0.707106769 : f32
    %37 = vector.broadcast %cst_20 : f32 to vector<256x8xf32>
    %38 = arith.mulf %34, %37 : vector<256x8xf32>
    %39 = math.erf %38 : vector<256x8xf32>
    %cst_21 = arith.constant 1.000000e+00 : f32
    %40 = vector.broadcast %cst_21 : f32 to vector<256x8xf32>
    %41 = arith.addf %40, %39 : vector<256x8xf32>
    %42 = arith.mulf %36, %41 : vector<256x8xf32>
    %c0_22 = arith.constant 0 : index
    %c0_23 = arith.constant 0 : index
    %c0_24 = arith.constant 0 : index
    %43 = vector.load %arg4[%c0_22, %c0_23, %c0_24] : memref<1x256x8xf32, #tpu.memory_space<vmem>>, vector<1x256x8xf32>
    %44 = vector.shape_cast %43 : vector<1x256x8xf32> to vector<256x8xf32>
    %45 = vector.shape_cast %42 : vector<256x8xf32> to vector<1x256x8xf32>
    tpu.vector_store %arg4[%c0_22, %c0_23, %c0_24], %45 {strides = array<i32>} : memref<1x256x8xf32, #tpu.memory_space<vmem>>, vector<1x256x8xf32>,
    return
  }
  func.func @transform_0(%arg0: i32) -> (i32, i32, i32, i32) {
    %c0_i32 = arith.constant 0 : i32
    %c0_i32_0 = arith.constant 0 : i32
    %c0_i32_1 = arith.constant 0 : i32
    %c0_i32_2 = arith.constant 0 : i32
    return %arg0, %c0_i32, %c0_i32_0, %c0_i32_1 : i32, i32, i32, i32
  }
  func.func @transform_1(%arg0: i32) -> (i32, i32) {
    %c0_i32 = arith.constant 0 : i32
    %c0_i32_0 = arith.constant 0 : i32
    %c0_i32_1 = arith.constant 0 : i32
    return %c0_i32, %c0_i32_0 : i32, i32
  }
  func.func @transform_2(%arg0: i32) -> (i32, i32) {
    %c0_i32 = arith.constant 0 : i32
    %c0_i32_0 = arith.constant 0 : i32
    %c0_i32_1 = arith.constant 0 : i32
    return %c0_i32, %c0_i32_0 : i32, i32
  }
  func.func @transform_3(%arg0: i32) -> (i32, i32, i32) {
    %c0_i32 = arith.constant 0 : i32
    %c0_i32_0 = arith.constant 0 : i32
    %c0_i32_1 = arith.constant 0 : i32
    return %arg0, %c0_i32, %c0_i32_0 : i32, i32, i32
  }
}

</mosaic_0001>

<llo_original>
// kernel: tpu_custom_call.1
$region0: #{tpu_custom_call.1}
  #allocation0 [shape = 'u32[]', space=smem, size = 0x4, offset = 0x4, fixed_abs, tag = 'smem constant byte address 0x4 - core index']
  #allocation1 [shape = 'u32[144,128]{1,0:T(1,128)}', space=vmem, size = 0x12000, scoped, tag = 'internal scratch']
  #allocation2 [shape = 'bf16[256,36]{1,0:T(8,128)(2,1)}', space=vmem, size = 0x10000, scoped, tag = 'scratch operand']
  %s0 = inlined_call_operand.vmem [shape: bf16[2,18,18,4], index: 0, kind: input, shape index: {}]
  %s1 = inlined_call_operand.vmem [shape: bf16[36,8], index: 1, kind: input, shape index: {}]
  %s2 = inlined_call_operand.vmem [shape: f32[1,8], index: 2, kind: input, shape index: {}]
  %s3 = inlined_call_operand.vmem [shape: f32[2,256,8], index: 3, kind: output, shape index: {}]
  %s4 = sld [smem:[#allocation0]]
  $region45: #{tpu_custom_call.1} parent=0
    _
  %s6 = ssub.s32 1, %s4
  %s7 = scalar_select 0, %s6, %s4
  loop: start=0, step=1, limit=4
  $region2: #{tpu_custom_call.1} parent=0 // loop_pre_header
    _
  $region3: #{tpu_custom_call.1} parent=0 // loop_header
    %s9 = sphi 0, %s13
    %p10 = scmp.ge.s32.totalorder %s9, 4
    %s19 = sphi 0, %s21
    %s22 = sphi 0, %s19
    %s23 = sphi 0, %s22
    %s39 = sphi 0, %s23
    %s43 = sphi 0, %s43
    %s45 = sphi 0, %s43
    %s46 = sphi 0, %s45
    %s60 = sphi 0, %s46
    %s64 = sphi 0, %s64
    %s66 = sphi 0, %s64
    %s67 = sphi 0, %s66
    %s81 = sphi 0, %s67
    %s87 = sphi 0, %s89
    %s90 = sphi 0, %s87
    %s91 = sphi 0, %s90
    %s107 = sphi 0, %s91
  $region4: #{tpu_custom_call.1} parent=0 // loop_header_branch
    %12 = sbr.rel (%p10) target = $region8
  $region5: #{tpu_custom_call.1} parent=0 // loop_body
    %s14 = ssub.s32 %s9, 1
    %s15 = ssub.s32 %s9, 2
    %s16 = sadd.s32 %s9, 1
    %s17 = ssub.s32 %s9, %s16
    %p18 = scmp.eq.s32.totalorder %s17, 0
    %s20 = sadd.s32 %s19, 1
    %s21 = scalar_select %p18, %s19, %s20
    %p24 = pneg %p18
    %p25 = scmp.eq.s32.totalorder %s9, 1
    %p26 = por %p24, %p25
    %p27 = scmp.ne.s32.totalorder %s19, %s22
    %p28 = scmp.eq.s32.totalorder %s9, 0
    %p29 = por %p27, %p28
    %p30 = scmp.ne.s32.totalorder %s19, %s22
    %p31 = scmp.eq.s32.totalorder %s14, 1
    %p32 = por %p30, %p31
    %p33 = scmp.ne.s32.totalorder %s22, %s23
    %p34 = scmp.eq.s32.totalorder %s14, 0
    %p35 = por %p33, %p34
    %p36 = scmp.ne.s32.totalorder %s22, %s23
    %p37 = scmp.eq.s32.totalorder %s15, 1
    %p38 = por %p36, %p37
    %p40 = scmp.ne.s32.totalorder %s23, %s39
    %p41 = scmp.eq.s32.totalorder %s15, 0
    %p42 = por %p40, %p41
    %s44 = sadd.s32 %s43, 1
    %p47 = scmp.eq.s32.totalorder %s9, 1
    %p48 = scmp.ne.s32.totalorder %s43, %s45
    %p49 = scmp.eq.s32.totalorder %s9, 0
    %p50 = por %p48, %p49
    %p51 = scmp.ne.s32.totalorder %s43, %s45
    %p52 = scmp.eq.s32.totalorder %s14, 1
    %p53 = por %p51, %p52
    %p54 = scmp.ne.s32.totalorder %s45, %s46
    %p55 = scmp.eq.s32.totalorder %s14, 0
    %p56 = por %p54, %p55
    %p57 = scmp.ne.s32.totalorder %s45, %s46
    %p58 = scmp.eq.s32.totalorder %s15, 1
    %p59 = por %p57, %p58
    %p61 = scmp.ne.s32.totalorder %s46, %s60
    %p62 = scmp.eq.s32.totalorder %s15, 0
    %p63 = por %p61, %p62
    %s65 = sadd.s32 %s64, 1
    %p68 = scmp.eq.s32.totalorder %s9, 1
    %p69 = scmp.ne.s32.totalorder %s64, %s66
    %p70 = scmp.eq.s32.totalorder %s9, 0
    %p71 = por %p69, %p70
    %p72 = scmp.ne.s32.totalorder %s64, %s66
    %p73 = scmp.eq.s32.totalorder %s14, 1
    %p74 = por %p72, %p73
    %p75 = scmp.ne.s32.totalorder %s66, %s67
    %p76 = scmp.eq.s32.totalorder %s14, 0
    %p77 = por %p75, %p76
    %p78 = scmp.ne.s32.totalorder %s66, %s67
    %p79 = scmp.eq.s32.totalorder %s15, 1
    %p80 = por %p78, %p79
    %p82 = scmp.ne.s32.totalorder %s67, %s81
    %p83 = scmp.eq.s32.totalorder %s15, 0
    %p84 = por %p82, %p83
    %s85 = ssub.s32 %s9, %s16
    %p86 = scmp.eq.s32.totalorder %s85, 0
    %s88 = sadd.s32 %s87, 1
    %s89 = scalar_select %p86, %s87, %s88
    %p92 = pneg %p86
    %p93 = scmp.eq.s32.totalorder %s9, 1
    %p94 = por %p92, %p93
    %p95 = scmp.ne.s32.totalorder %s87, %s90
    %p96 = scmp.eq.s32.totalorder %s9, 0
    %p97 = por %p95, %p96
    %p98 = scmp.ne.s32.totalorder %s87, %s90
    %p99 = scmp.eq.s32.totalorder %s14, 1
    %p100 = por %p98, %p99
    %p101 = scmp.ne.s32.totalorder %s90, %s91
    %p102 = scmp.eq.s32.totalorder %s14, 0
    %p103 = por %p101, %p102
    %p104 = scmp.ne.s32.totalorder %s90, %s91
    %p105 = scmp.eq.s32.totalorder %s15, 1
    %p106 = por %p104, %p105
    %p108 = scmp.ne.s32.totalorder %s91, %s107
    %p109 = scmp.eq.s32.totalorder %s15, 0
    %p110 = por %p108, %p109
    %p111 = scmp.le.s32.totalorder 1, %s9
    %p112 = scmp.lt.s32.totalorder %s9, 3
    %p113 = pnand %p111, %p112
    %p114 = pneg %p113
    // Predicated region
    $region9: #{tpu_custom_call.1} parent=5 // pred_check
      _
    $region10: #{tpu_custom_call.1} parent=5 // pred_check_branch
      %116 = sbr.rel (%p113) target = $region12
    $region11: #{tpu_custom_call.1} parent=5 // pred_region
      %s117 = ssub.s32 %s9, 1
      // Predicated region
      $region13: #{tpu_custom_call.1} parent=11 // pred_check
        %p118 = pneg %p56
      $region14: #{tpu_custom_call.1} parent=11 // pred_check_branch
        %120 = sbr.rel (%p118) target = $region16
      $region15: #{tpu_custom_call.1} parent=11 // pred_region
        _
      $region16: #{tpu_custom_call.1} parent=11 // pred_fallthru
        _
      // Predicated region
      $region17: #{tpu_custom_call.1} parent=11 // pred_check
        %p121 = pneg %p77
      $region18: #{tpu_custom_call.1} parent=11 // pred_check_branch
        %123 = sbr.rel (%p121) target = $region20
      $region19: #{tpu_custom_call.1} parent=11 // pred_region
        _
      $region20: #{tpu_custom_call.1} parent=11 // pred_fallthru
        _
    $region12: #{tpu_custom_call.1} parent=5 // pred_fallthru
      _
    %p124 = scmp.lt.s32.totalorder %s9, 2
    // Predicated region
    $region21: #{tpu_custom_call.1} parent=5 // pred_check
      %p125 = pneg %p124
    $region22: #{tpu_custom_call.1} parent=5 // pred_check_branch
      %127 = sbr.rel (%p125) target = $region24
    $region23: #{tpu_custom_call.1} parent=5 // pred_region
      // Predicated region
      $region25: #{tpu_custom_call.1} parent=23 // pred_check
        %p128 = pneg %p29
      $region26: #{tpu_custom_call.1} parent=23 // pred_check_branch
        %130 = sbr.rel (%p128) target = $region28
      $region27: #{tpu_custom_call.1} parent=23 // pred_region
        %p131 = scmp.lt.s32.totalorder %s9, 1
        %s132 = scalar_select %p131, %s9, 1
        %s133 = smul.addr %s132, 54
        %s134 = smul.addr %s133, 4
        %s135 = scalar_lea.vmem %s0, %s134
      $region28: #{tpu_custom_call.1} parent=23 // pred_fallthru
        _
    $region24: #{tpu_custom_call.1} parent=5 // pred_fallthru
      _
    %p136 = scmp.le.s32.totalorder 1, %s9
    %p137 = scmp.lt.s32.totalorder %s9, 3
    %p138 = pnand %p136, %p137
    %p139 = pneg %p138
    // Predicated region
    $region29: #{tpu_custom_call.1} parent=5 // pred_check
      _
    $region30: #{tpu_custom_call.1} parent=5 // pred_check_branch
      %141 = sbr.rel (%p138) target = $region32
    $region31: #{tpu_custom_call.1} parent=5 // pred_region
      %s142 = ssub.s32 %s9, 1
      %p143 = scmp.lt.s32.totalorder %s14, 1
      %s144 = scalar_select %p143, %s14, 1
      %s145 = smul.addr %s144, 54
      %s146 = smul.addr %s145, 4
      %s147 = scalar_lea.vmem %s0, %s146
      %p148 = pneg %p35
      %p149 = pneg %p32
      %p150 = pneg %p56
      %p151 = pneg %p53
      %p152 = pneg %p77
      %p153 = pneg %p74
      %p154 = pneg %p103
      %p155 = pneg %p100
      %p156 = scmp.lt.s32.totalorder %s14, 1
      %s157 = scalar_select %p156, %s14, 1
      %s158 = smul.addr %s157, 32
      %s159 = smul.addr %s158, 8
      %s160 = scalar_lea.vmem %s3, %s159
      %p161 = scmp.lt.s32.totalorder %s14, 1
      %s162 = scalar_select %p161, %s14, 1
      %s163 = smul.addr %s162, 54
      %s164 = smul.addr %s163, 4
      %s165 = scalar_lea.vmem %s0, %s164
      %p166 = scmp.lt.s32.totalorder %s14, 1
      %s167 = scalar_select %p166, %s14, 1
      %s168 = smul.addr %s167, 32
      %s169 = smul.addr %s168, 8
      %s170 = scalar_lea.vmem %s3, %s169
      %v172 = vld [vmem:[%s165] sm:$0xf]
      %v173 = vld [vmem:[%s165 + $0x4] sm:$0xf]
      %v174 = vld [vmem:[%s165 + $0x8] sm:$0x1]
      %v175 = vld [vmem:[%s165 + $0xc] sm:$0xf]
      %v176 = vld [vmem:[%s165 + $0x10] sm:$0xf]
      %v177 = vld [vmem:[%s165 + $0x14] sm:$0x1]
      %v178 = vld [vmem:[%s165 + $0x18] sm:$0xf]
      %v179 = vld [vmem:[%s165 + $0x1c] sm:$0xf]
      %v180 = vld [vmem:[%s165 + $0x20] sm:$0x1]
      %v181 = vld [vmem:[%s165 + $0x24] sm:$0xf]
      %v182 = vld [vmem:[%s165 + $0x28] sm:$0xf]
      %v183 = vld [vmem:[%s165 + $0x2c] sm:$0x1]
      %v184 = vld [vmem:[%s165 + $0x30] sm:$0xf]
      %v185 = vld [vmem:[%s165 + $0x34] sm:$0xf]
      %v186 = vld [vmem:[%s165 + $0x38] sm:$0x1]
      %v187 = vld [vmem:[%s165 + $0x3c] sm:$0xf]
      %v188 = vld [vmem:[%s165 + $0x40] sm:$0xf]
      %v189 = vld [vmem:[%s165 + $0x44] sm:$0x1]
      %v190 = vld [vmem:[%s165 + $0x48] sm:$0xf]
      %v191 = vld [vmem:[%s165 + $0x4c] sm:$0xf]
      %v192 = vld [vmem:[%s165 + $0x50] sm:$0x1]
      %v193 = vld [vmem:[%s165 + $0x54] sm:$0xf]
      %v194 = vld [vmem:[%s165 + $0x58] sm:$0xf]
      %v195 = vld [vmem:[%s165 + $0x5c] sm:$0x1]
      %v196 = vld [vmem:[%s165 + $0x60] sm:$0xf]
      %v197 = vld [vmem:[%s165 + $0x64] sm:$0xf]
      %v198 = vld [vmem:[%s165 + $0x68] sm:$0x1]
      %v199 = vld [vmem:[%s165 + $0x6c] sm:$0xf]
      %v200 = vld [vmem:[%s165 + $0x70] sm:$0xf]
      %v201 = vld [vmem:[%s165 + $0x74] sm:$0x1]
      %v202 = vld [vmem:[%s165 + $0x78] sm:$0xf]
      %v203 = vld [vmem:[%s165 + $0x7c] sm:$0xf]
      %v204 = vld [vmem:[%s165 + $0x80] sm:$0x1]
      %v205 = vld [vmem:[%s165 + $0x84] sm:$0xf]
      %v206 = vld [vmem:[%s165 + $0x88] sm:$0xf]
      %v207 = vld [vmem:[%s165 + $0x8c] sm:$0x1]
      %v208 = vld [vmem:[%s165 + $0x90] sm:$0xf]
      %v209 = vld [vmem:[%s165 + $0x94] sm:$0xf]
      %v210 = vld [vmem:[%s165 + $0x98] sm:$0x1]
      %v211 = vld [vmem:[%s165 + $0x9c] sm:$0xf]
      %v212 = vld [vmem:[%s165 + $0xa0] sm:$0xf]
      %v213 = vld [vmem:[%s165 + $0xa4] sm:$0x1]
      %v214 = vld [vmem:[%s165 + $0xa8] sm:$0xf]
      %v215 = vld [vmem:[%s165 + $0xac] sm:$0xf]
      %v216 = vld [vmem:[%s165 + $0xb0] sm:$0x1]
      %v217 = vld [vmem:[%s165 + $0xb4] sm:$0xf]
      %v218 = vld [vmem:[%s165 + $0xb8] sm:$0xf]
      %v219 = vld [vmem:[%s165 + $0xbc] sm:$0x1]
      %v220 = vld [vmem:[%s165 + $0xc0] sm:$0xf]
      %v221 = vld [vmem:[%s165 + $0xc4] sm:$0xf]
      %v222 = vld [vmem:[%s165 + $0xc8] sm:$0x1]
      %v223 = vld [vmem:[%s165 + $0xcc] sm:$0xf]
      %v224 = vld [vmem:[%s165 + $0xd0] sm:$0xf]
      %v225 = vld [vmem:[%s165 + $0xd4] sm:$0x1]
      %vm226 = vcmask 27648
      %227 = vst.msk [vmem:[#allocation2] sm:$0xf] %vm226, %v172
      %228 = vst.msk [vmem:[#allocation2 + $0x4] sm:$0xf] %vm226, %v173
      %229 = vst.msk [vmem:[#allocation2 + $0x8] sm:$0xf] %vm226, %v175
      %230 = vst.msk [vmem:[#allocation2 + $0xc] sm:$0xf] %vm226, %v176
      %231 = vst.msk [vmem:[#allocation2 + $0x10] sm:$0xf] %vm226, %v178
      %232 = vst.msk [vmem:[#allocation2 + $0x14] sm:$0xf] %vm226, %v179
      %233 = vst.msk [vmem:[#allocation2 + $0x18] sm:$0xf] %vm226, %v181
      %234 = vst.msk [vmem:[#allocation2 + $0x1c] sm:$0xf] %vm226, %v182
      %235 = vst.msk [vmem:[#allocation2 + $0x20] sm:$0xf] %vm226, %v184
      %236 = vst.msk [vmem:[#allocation2 + $0x24] sm:$0xf] %vm226, %v185
      %237 = vst.msk [vmem:[#allocation2 + $0x28] sm:$0xf] %vm226, %v187
      %238 = vst.msk [vmem:[#allocation2 + $0x2c] sm:$0xf] %vm226, %v188
      %239 = vst.msk [vmem:[#allocation2 + $0x30] sm:$0xf] %vm226, %v190
      %240 = vst.msk [vmem:[#allocation2 + $0x34] sm:$0xf] %vm226, %v191
      %241 = vst.msk [vmem:[#allocation2 + $0x38] sm:$0xf] %vm226, %v193
      %242 = vst.msk [vmem:[#allocation2 + $0x3c] sm:$0xf] %vm226, %v194
      %243 = vst.msk [vmem:[#allocation2 + $0x40] sm:$0xf] %vm226, %v196
      %244 = vst.msk [vmem:[#allocation2 + $0x44] sm:$0xf] %vm226, %v197
      %245 = vst.msk [vmem:[#allocation2 + $0x48] sm:$0xf] %vm226, %v199
      %246 = vst.msk [vmem:[#allocation2 + $0x4c] sm:$0xf] %vm226, %v200
      %247 = vst.msk [vmem:[#allocation2 + $0x50] sm:$0xf] %vm226, %v202
      %248 = vst.msk [vmem:[#allocation2 + $0x54] sm:$0xf] %vm226, %v203
      %249 = vst.msk [vmem:[#allocation2 + $0x58] sm:$0xf] %vm226, %v205
      %250 = vst.msk [vmem:[#allocation2 + $0x5c] sm:$0xf] %vm226, %v206
      %251 = vst.msk [vmem:[#allocation2 + $0x60] sm:$0xf] %vm226, %v208
      %252 = vst.msk [vmem:[#allocation2 + $0x64] sm:$0xf] %vm226, %v209
      %253 = vst.msk [vmem:[#allocation2 + $0x68] sm:$0xf] %vm226, %v211
      %254 = vst.msk [vmem:[#allocation2 + $0x6c] sm:$0xf] %vm226, %v212
      %255 = vst.msk [vmem:[#allocation2 + $0x70] sm:$0xf] %vm226, %v214
      %256 = vst.msk [vmem:[#allocation2 + $0x74] sm:$0xf] %vm226, %v215
      %257 = vst.msk [vmem:[#allocation2 + $0x78] sm:$0xf] %vm226, %v217
      %258 = vst.msk [vmem:[#allocation2 + $0x7c] sm:$0xf] %vm226, %v218
      %vm259 = vsmask.f32 3328
      %vm260 = vsmask.f32 7440
      %vm261 = vmor %vm259, %vm260
      %v263 = vshrl.u32 %v172, 16
      %v265 = vrot.slane %v263, 4
      %v266 = vshll.u32 %v172, 16
      %v268 = vrot.slane %v266, 5
      %v269 = vor.u32 %v265, %v268
      %v270 = vrot.slane %v269, 4
      %v272 = vshll.u32 %v173, 16
      %v274 = vrot.slane %v272, 5
      %v275 = vsel %vm261, %v270, %v274
      %v276 = vshrl.u32 %v173, 16
      %v278 = vrot.slane %v276, 4
      %v279 = vor.u32 %v278, %v274
      %v280 = vrot.slane %v279, 4
      %v282 = vshll.u32 %v174, 16
      %v284 = vrot.slane %v282, 5
      %v285 = vsel %vm261, %v280, %v284
      %v287 = vshrl.u32 %v175, 16
      %v289 = vrot.slane %v287, 4
      %v290 = vshll.u32 %v175, 16
      %v292 = vrot.slane %v290, 5
      %v293 = vor.u32 %v289, %v292
      %v294 = vrot.slane %v293, 4
      %v296 = vshll.u32 %v176, 16
      %v298 = vrot.slane %v296, 5
      %v299 = vsel %vm261, %v294, %v298
      %v300 = vshrl.u32 %v176, 16
      %v302 = vrot.slane %v300, 4
      %v303 = vor.u32 %v302, %v298
      %v304 = vrot.slane %v303, 4
      %v306 = vshll.u32 %v177, 16
      %v308 = vrot.slane %v306, 5
      %v309 = vsel %vm261, %v304, %v308
      %v311 = vshrl.u32 %v178, 16
      %v313 = vrot.slane %v311, 4
      %v314 = vshll.u32 %v178, 16
      %v316 = vrot.slane %v314, 5
      %v317 = vor.u32 %v313, %v316
      %v318 = vrot.slane %v317, 4
      %v320 = vshll.u32 %v179, 16
      %v322 = vrot.slane %v320, 5
      %v323 = vsel %vm261, %v318, %v322
      %v324 = vshrl.u32 %v179, 16
      %v326 = vrot.slane %v324, 4
      %v327 = vor.u32 %v326, %v322
      %v328 = vrot.slane %v327, 4
      %v330 = vshll.u32 %v180, 16
      %v332 = vrot.slane %v330, 5
      %v333 = vsel %vm261, %v328, %v332
      %v335 = vshrl.u32 %v181, 16
      %v337 = vrot.slane %v335, 4
      %v338 = vshll.u32 %v181, 16
      %v340 = vrot.slane %v338, 5
      %v341 = vor.u32 %v337, %v340
      %v342 = vrot.slane %v341, 4
      %v344 = vshll.u32 %v182, 16
      %v346 = vrot.slane %v344, 5
      %v347 = vsel %vm261, %v342, %v346
      %v348 = vshrl.u32 %v182, 16
      %v350 = vrot.slane %v348, 4
      %v351 = vor.u32 %v350, %v346
      %v352 = vrot.slane %v351, 4
      %v354 = vshll.u32 %v183, 16
      %v356 = vrot.slane %v354, 5
      %v357 = vsel %vm261, %v352, %v356
      %v359 = vshrl.u32 %v184, 16
      %v361 = vrot.slane %v359, 4
      %v362 = vshll.u32 %v184, 16
      %v364 = vrot.slane %v362, 5
      %v365 = vor.u32 %v361, %v364
      %v366 = vrot.slane %v365, 4
      %v368 = vshll.u32 %v185, 16
      %v370 = vrot.slane %v368, 5
      %v371 = vsel %vm261, %v366, %v370
      %v372 = vshrl.u32 %v185, 16
      %v374 = vrot.slane %v372, 4
      %v375 = vor.u32 %v374, %v370
      %v376 = vrot.slane %v375, 4
      %v378 = vshll.u32 %v186, 16
      %v380 = vrot.slane %v378, 5
      %v381 = vsel %vm261, %v376, %v380
      %v383 = vshrl.u32 %v187, 16
      %v385 = vrot.slane %v383, 4
      %v386 = vshll.u32 %v187, 16
      %v388 = vrot.slane %v386, 5
      %v389 = vor.u32 %v385, %v388
      %v390 = vrot.slane %v389, 4
      %v392 = vshll.u32 %v188, 16
      %v394 = vrot.slane %v392, 5
      %v395 = vsel %vm261, %v390, %v394
      %v396 = vshrl.u32 %v188, 16
      %v398 = vrot.slane %v396, 4
      %v399 = vor.u32 %v398, %v394
      %v400 = vrot.slane %v399, 4
      %v402 = vshll.u32 %v189, 16
      %v404 = vrot.slane %v402, 5
      %v405 = vsel %vm261, %v400, %v404
      %v407 = vshrl.u32 %v190, 16
      %v409 = vrot.slane %v407, 4
      %v410 = vshll.u32 %v190, 16
      %v412 = vrot.slane %v410, 5
      %v413 = vor.u32 %v409, %v412
      %v414 = vrot.slane %v413, 4
      %v416 = vshll.u32 %v191, 16
      %v418 = vrot.slane %v416, 5
      %v419 = vsel %vm261, %v414, %v418
      %v420 = vshrl.u32 %v191, 16
      %v422 = vrot.slane %v420, 4
      %v423 = vor.u32 %v422, %v418
      %v424 = vrot.slane %v423, 4
      %v426 = vshll.u32 %v192, 16
      %v428 = vrot.slane %v426, 5
      %v429 = vsel %vm261, %v424, %v428
      %v431 = vshrl.u32 %v193, 16
      %v433 = vrot.slane %v431, 4
      %v434 = vshll.u32 %v193, 16
      %v436 = vrot.slane %v434, 5
      %v437 = vor.u32 %v433, %v436
      %v438 = vrot.slane %v437, 4
      %v440 = vshll.u32 %v194, 16
      %v442 = vrot.slane %v440, 5
      %v443 = vsel %vm261, %v438, %v442
      %v444 = vshrl.u32 %v194, 16
      %v446 = vrot.slane %v444, 4
      %v447 = vor.u32 %v446, %v442
      %v448 = vrot.slane %v447, 4
      %v450 = vshll.u32 %v195, 16
      %v452 = vrot.slane %v450, 5
      %v453 = vsel %vm261, %v448, %v452
      %v455 = vshrl.u32 %v196, 16
      %v457 = vrot.slane %v455, 4
      %v458 = vshll.u32 %v196, 16
      %v460 = vrot.slane %v458, 5
      %v461 = vor.u32 %v457, %v460
      %v462 = vrot.slane %v461, 4
      %v464 = vshll.u32 %v197, 16
      %v466 = vrot.slane %v464, 5
      %v467 = vsel %vm261, %v462, %v466
      %v468 = vshrl.u32 %v197, 16
      %v470 = vrot.slane %v468, 4
      %v471 = vor.u32 %v470, %v466
      %v472 = vrot.slane %v471, 4
      %v474 = vshll.u32 %v198, 16
      %v476 = vrot.slane %v474, 5
      %v477 = vsel %vm261, %v472, %v476
      %v479 = vshrl.u32 %v199, 16
      %v481 = vrot.slane %v479, 4
      %v482 = vshll.u32 %v199, 16
      %v484 = vrot.slane %v482, 5
      %v485 = vor.u32 %v481, %v484
      %v486 = vrot.slane %v485, 4
      %v488 = vshll.u32 %v200, 16
      %v490 = vrot.slane %v488, 5
      %v491 = vsel %vm261, %v486, %v490
      %v492 = vshrl.u32 %v200, 16
      %v494 = vrot.slane %v492, 4
      %v495 = vor.u32 %v494, %v490
      %v496 = vrot.slane %v495, 4
      %v498 = vshll.u32 %v201, 16
      %v500 = vrot.slane %v498, 5
      %v501 = vsel %vm261, %v496, %v500
      %v503 = vshrl.u32 %v202, 16
      %v505 = vrot.slane %v503, 4
      %v506 = vshll.u32 %v202, 16
      %v508 = vrot.slane %v506, 5
      %v509 = vor.u32 %v505, %v508
      %v510 = vrot.slane %v509, 4
      %v512 = vshll.u32 %v203, 16
      %v514 = vrot.slane %v512, 5
      %v515 = vsel %vm261, %v510, %v514
      %v516 = vshrl.u32 %v203, 16
      %v518 = vrot.slane %v516, 4
      %v519 = vor.u32 %v518, %v514
      %v520 = vrot.slane %v519, 4
      %v522 = vshll.u32 %v204, 16
      %v524 = vrot.slane %v522, 5
      %v525 = vsel %vm261, %v520, %v524
      %v527 = vshrl.u32 %v205, 16
      %v529 = vrot.slane %v527, 4
      %v530 = vshll.u32 %v205, 16
      %v532 = vrot.slane %v530, 5
      %v533 = vor.u32 %v529, %v532
      %v534 = vrot.slane %v533, 4
      %v536 = vshll.u32 %v206, 16
      %v538 = vrot.slane %v536, 5
      %v539 = vsel %vm261, %v534, %v538
      %v540 = vshrl.u32 %v206, 16
      %v542 = vrot.slane %v540, 4
      %v543 = vor.u32 %v542, %v538
      %v544 = vrot.slane %v543, 4
      %v546 = vshll.u32 %v207, 16
      %v548 = vrot.slane %v546, 5
      %v549 = vsel %vm261, %v544, %v548
      %v551 = vshrl.u32 %v208, 16
      %v553 = vrot.slane %v551, 4
      %v554 = vshll.u32 %v208, 16
      %v556 = vrot.slane %v554, 5
      %v557 = vor.u32 %v553, %v556
      %v558 = vrot.slane %v557, 4
      %v560 = vshll.u32 %v209, 16
      %v562 = vrot.slane %v560, 5
      %v563 = vsel %vm261, %v558, %v562
      %v564 = vshrl.u32 %v209, 16
      %v566 = vrot.slane %v564, 4
      %v567 = vor.u32 %v566, %v562
      %v568 = vrot.slane %v567, 4
      %v570 = vshll.u32 %v210, 16
      %v572 = vrot.slane %v570, 5
      %v573 = vsel %vm261, %v568, %v572
      %v575 = vshrl.u32 %v211, 16
      %v577 = vrot.slane %v575, 4
      %v578 = vshll.u32 %v211, 16
      %v580 = vrot.slane %v578, 5
      %v581 = vor.u32 %v577, %v580
      %v582 = vrot.slane %v581, 4
      %v584 = vshll.u32 %v212, 16
      %v586 = vrot.slane %v584, 5
      %v587 = vsel %vm261, %v582, %v586
      %v588 = vshrl.u32 %v212, 16
      %v590 = vrot.slane %v588, 4
      %v591 = vor.u32 %v590, %v586
      %v592 = vrot.slane %v591, 4
      %v594 = vshll.u32 %v213, 16
      %v596 = vrot.slane %v594, 5
      %v597 = vsel %vm261, %v592, %v596
      %v599 = vshrl.u32 %v214, 16
      %v601 = vrot.slane %v599, 4
      %v602 = vshll.u32 %v214, 16
      %v604 = vrot.slane %v602, 5
      %v605 = vor.u32 %v601, %v604
      %v606 = vrot.slane %v605, 4
      %v608 = vshll.u32 %v215, 16
      %v610 = vrot.slane %v608, 5
      %v611 = vsel %vm261, %v606, %v610
      %v612 = vshrl.u32 %v215, 16
      %v614 = vrot.slane %v612, 4
      %v615 = vor.u32 %v614, %v610
      %v616 = vrot.slane %v615, 4
      %v618 = vshll.u32 %v216, 16
      %v620 = vrot.slane %v618, 5
      %v621 = vsel %vm261, %v616, %v620
      %v623 = vshrl.u32 %v217, 16
      %v625 = vrot.slane %v623, 4
      %v626 = vshll.u32 %v217, 16
      %v628 = vrot.slane %v626, 5
      %v629 = vor.u32 %v625, %v628
      %v630 = vrot.slane %v629, 4
      %v632 = vshll.u32 %v218, 16
      %v634 = vrot.slane %v632, 5
      %v635 = vsel %vm261, %v630, %v634
      %v636 = vshrl.u32 %v218, 16
      %v638 = vrot.slane %v636, 4
      %v639 = vor.u32 %v638, %v634
      %v640 = vrot.slane %v639, 4
      %v642 = vshll.u32 %v219, 16
      %v644 = vrot.slane %v642, 5
      %v645 = vsel %vm261, %v640, %v644
      %646 = vrot.lane.b32.xlu0 %v275, 4
      %v647 = vpop.permute.xlu0 %646
      %648 = vrot.lane.b32.xlu0 %v285, 4
      %v649 = vpop.permute.xlu0 %648
      %650 = vrot.lane.b32.xlu0 %v299, 4
      %v651 = vpop.permute.xlu0 %650
      %652 = vrot.lane.b32.xlu0 %v309, 4
      %v653 = vpop.permute.xlu0 %652
      %654 = vrot.lane.b32.xlu0 %v323, 4
      %v655 = vpop.permute.xlu0 %654
      %656 = vrot.lane.b32.xlu0 %v333, 4
      %v657 = vpop.permute.xlu0 %656
      %658 = vrot.lane.b32.xlu0 %v347, 4
      %v659 = vpop.permute.xlu0 %658
      %660 = vrot.lane.b32.xlu0 %v357, 4
      %v661 = vpop.permute.xlu0 %660
      %662 = vrot.lane.b32.xlu0 %v371, 4
      %v663 = vpop.permute.xlu0 %662
      %664 = vrot.lane.b32.xlu0 %v381, 4
      %v665 = vpop.permute.xlu0 %664
      %666 = vrot.lane.b32.xlu0 %v395, 4
      %v667 = vpop.permute.xlu0 %666
      %668 = vrot.lane.b32.xlu0 %v405, 4
      %v669 = vpop.permute.xlu0 %668
      %670 = vrot.lane.b32.xlu0 %v419, 4
      %v671 = vpop.permute.xlu0 %670
      %672 = vrot.lane.b32.xlu0 %v429, 4
      %v673 = vpop.permute.xlu0 %672
      %674 = vrot.lane.b32.xlu0 %v443, 4
      %v675 = vpop.permute.xlu0 %674
      %676 = vrot.lane.b32.xlu0 %v453, 4
      %v677 = vpop.permute.xlu0 %676
      %678 = vrot.lane.b32.xlu0 %v467, 4
      %v679 = vpop.permute.xlu0 %678
      %680 = vrot.lane.b32.xlu0 %v477, 4
      %v681 = vpop.permute.xlu0 %680
      %682 = vrot.lane.b32.xlu0 %v491, 4
      %v683 = vpop.permute.xlu0 %682
      %684 = vrot.lane.b32.xlu0 %v501, 4
      %v685 = vpop.permute.xlu0 %684
      %686 = vrot.lane.b32.xlu0 %v515, 4
      %v687 = vpop.permute.xlu0 %686
      %688 = vrot.lane.b32.xlu0 %v525, 4
      %v689 = vpop.permute.xlu0 %688
      %690 = vrot.lane.b32.xlu0 %v539, 4
      %v691 = vpop.permute.xlu0 %690
      %692 = vrot.lane.b32.xlu0 %v549, 4
      %v693 = vpop.permute.xlu0 %692
      %694 = vrot.lane.b32.xlu0 %v563, 4
      %v695 = vpop.permute.xlu0 %694
      %696 = vrot.lane.b32.xlu0 %v573, 4
      %v697 = vpop.permute.xlu0 %696
      %698 = vrot.lane.b32.xlu0 %v587, 4
      %v699 = vpop.permute.xlu0 %698
      %700 = vrot.lane.b32.xlu0 %v597, 4
      %v701 = vpop.permute.xlu0 %700
      %702 = vrot.lane.b32.xlu0 %v611, 4
      %v703 = vpop.permute.xlu0 %702
      %704 = vrot.lane.b32.xlu0 %v621, 4
      %v705 = vpop.permute.xlu0 %704
      %706 = vrot.lane.b32.xlu0 %v635, 4
      %v707 = vpop.permute.xlu0 %706
      %708 = vrot.lane.b32.xlu0 %v645, 4
      %v709 = vpop.permute.xlu0 %708
      %vm742 = vcmask 60448
      %743 = vst.msk [vmem:[#allocation2] sm:$0xf] %vm742, %v647
      %744 = vst.msk [vmem:[#allocation2 + $0x4] sm:$0xf] %vm742, %v649
      %745 = vst.msk [vmem:[#allocation2 + $0x8] sm:$0xf] %vm742, %v651
      %746 = vst.msk [vmem:[#allocation2 + $0xc] sm:$0xf] %vm742, %v653
      %747 = vst.msk [vmem:[#allocation2 + $0x10] sm:$0xf] %vm742, %v655
      %748 = vst.msk [vmem:[#allocation2 + $0x14] sm:$0xf] %vm742, %v657
      %749 = vst.msk [vmem:[#allocation2 + $0x18] sm:$0xf] %vm742, %v659
      %750 = vst.msk [vmem:[#allocation2 + $0x1c] sm:$0xf] %vm742, %v661
      %751 = vst.msk [vmem:[#allocation2 + $0x20] sm:$0xf] %vm742, %v663
      %752 = vst.msk [vmem:[#allocation2 + $0x24] sm:$0xf] %vm742, %v665
      %753 = vst.msk [vmem:[#allocation2 + $0x28] sm:$0xf] %vm742, %v667
      %754 = vst.msk [vmem:[#allocation2 + $0x2c] sm:$0xf] %vm742, %v669
      %755 = vst.msk [vmem:[#allocation2 + $0x30] sm:$0xf] %vm742, %v671
      %756 = vst.msk [vmem:[#allocation2 + $0x34] sm:$0xf] %vm742, %v673
      %757 = vst.msk [vmem:[#allocation2 + $0x38] sm:$0xf] %vm742, %v675
      %758 = vst.msk [vmem:[#allocation2 + $0x3c] sm:$0xf] %vm742, %v677
      %759 = vst.msk [vmem:[#allocation2 + $0x40] sm:$0xf] %vm742, %v679
      %760 = vst.msk [vmem:[#allocation2 + $0x44] sm:$0xf] %vm742, %v681
      %761 = vst.msk [vmem:[#allocation2 + $0x48] sm:$0xf] %vm742, %v683
      %762 = vst.msk [vmem:[#allocation2 + $0x4c] sm:$0xf] %vm742, %v685
      %763 = vst.msk [vmem:[#allocation2 + $0x50] sm:$0xf] %vm742, %v687
      %764 = vst.msk [vmem:[#allocation2 + $0x54] sm:$0xf] %vm742, %v689
      %765 = vst.msk [vmem:[#allocation2 + $0x58] sm:$0xf] %vm742, %v691
      %766 = vst.msk [vmem:[#allocation2 + $0x5c] sm:$0xf] %vm742, %v693
      %767 = vst.msk [vmem:[#allocation2 + $0x60] sm:$0xf] %vm742, %v695
      %768 = vst.msk [vmem:[#allocation2 + $0x64] sm:$0xf] %vm742, %v697
      %769 = vst.msk [vmem:[#allocation2 + $0x68] sm:$0xf] %vm742, %v699
      %770 = vst.msk [vmem:[#allocation2 + $0x6c] sm:$0xf] %vm742, %v701
      %771 = vst.msk [vmem:[#allocation2 + $0x70] sm:$0xf] %vm742, %v703
      %772 = vst.msk [vmem:[#allocation2 + $0x74] sm:$0xf] %vm742, %v705
      %773 = vst.msk [vmem:[#allocation2 + $0x78] sm:$0xf] %vm742, %v707
      %774 = vst.msk [vmem:[#allocation2 + $0x7c] sm:$0xf] %vm742, %v709
      %vm823 = vcmask 1042432
      %vm824 = vcmask 1046532
      %vm825 = vmor %vm823, %vm824
      %v826 = vrot.slane %v172, 5
      %v827 = vrot.slane %v826, 4
      %v828 = vrot.slane %v173, 5
      %v829 = vsel %vm825, %v827, %v828
      %v830 = vrot.slane %v828, 4
      %v831 = vrot.slane %v174, 5
      %v832 = vsel %vm825, %v830, %v831
      %v833 = vrot.slane %v175, 5
      %v834 = vrot.slane %v833, 4
      %v835 = vrot.slane %v176, 5
      %v836 = vsel %vm825, %v834, %v835
      %v837 = vrot.slane %v835, 4
      %v838 = vrot.slane %v177, 5
      %v839 = vsel %vm825, %v837, %v838
      %v840 = vrot.slane %v178, 5
      %v841 = vrot.slane %v840, 4
      %v842 = vrot.slane %v179, 5
      %v843 = vsel %vm825, %v841, %v842
      %v844 = vrot.slane %v842, 4
      %v845 = vrot.slane %v180, 5
      %v846 = vsel %vm825, %v844, %v845
      %v847 = vrot.slane %v181, 5
      %v848 = vrot.slane %v847, 4
      %v849 = vrot.slane %v182, 5
      %v850 = vsel %vm825, %v848, %v849
      %v851 = vrot.slane %v849, 4
      %v852 = vrot.slane %v183, 5
      %v853 = vsel %vm825, %v851, %v852
      %v854 = vrot.slane %v184, 5
      %v855 = vrot.slane %v854, 4
      %v856 = vrot.slane %v185, 5
      %v857 = vsel %vm825, %v855, %v856
      %v858 = vrot.slane %v856, 4
      %v859 = vrot.slane %v186, 5
      %v860 = vsel %vm825, %v858, %v859
      %v861 = vrot.slane %v187, 5
      %v862 = vrot.slane %v861, 4
      %v863 = vrot.slane %v188, 5
      %v864 = vsel %vm825, %v862, %v863
      %v865 = vrot.slane %v863, 4
      %v866 = vrot.slane %v189, 5
      %v867 = vsel %vm825, %v865, %v866
      %v868 = vrot.slane %v190, 5
      %v869 = vrot.slane %v868, 4
      %v870 = vrot.slane %v191, 5
      %v871 = vsel %vm825, %v869, %v870
      %v872 = vrot.slane %v870, 4
      %v873 = vrot.slane %v192, 5
      %v874 = vsel %vm825, %v872, %v873
      %v875 = vrot.slane %v193, 5
      %v876 = vrot.slane %v875, 4
      %v877 = vrot.slane %v194, 5
      %v878 = vsel %vm825, %v876, %v877
      %v879 = vrot.slane %v877, 4
      %v880 = vrot.slane %v195, 5
      %v881 = vsel %vm825, %v879, %v880
      %v882 = vrot.slane %v196, 5
      %v883 = vrot.slane %v882, 4
      %v884 = vrot.slane %v197, 5
      %v885 = vsel %vm825, %v883, %v884
      %v886 = vrot.slane %v884, 4
      %v887 = vrot.slane %v198, 5
      %v888 = vsel %vm825, %v886, %v887
      %v889 = vrot.slane %v199, 5
      %v890 = vrot.slane %v889, 4
      %v891 = vrot.slane %v200, 5
      %v892 = vsel %vm825, %v890, %v891
      %v893 = vrot.slane %v891, 4
      %v894 = vrot.slane %v201, 5
      %v895 = vsel %vm825, %v893, %v894
      %v896 = vrot.slane %v202, 5
      %v897 = vrot.slane %v896, 4
      %v898 = vrot.slane %v203, 5
      %v899 = vsel %vm825, %v897, %v898
      %v900 = vrot.slane %v898, 4
      %v901 = vrot.slane %v204, 5
      %v902 = vsel %vm825, %v900, %v901
      %v903 = vrot.slane %v205, 5
      %v904 = vrot.slane %v903, 4
      %v905 = vrot.slane %v206, 5
      %v906 = vsel %vm825, %v904, %v905
      %v907 = vrot.slane %v905, 4
      %v908 = vrot.slane %v207, 5
      %v909 = vsel %vm825, %v907, %v908
      %v910 = vrot.slane %v208, 5
      %v911 = vrot.slane %v910, 4
      %v912 = vrot.slane %v209, 5
      %v913 = vsel %vm825, %v911, %v912
      %v914 = vrot.slane %v912, 4
      %v915 = vrot.slane %v210, 5
      %v916 = vsel %vm825, %v914, %v915
      %v917 = vrot.slane %v211, 5
      %v918 = vrot.slane %v917, 4
      %v919 = vrot.slane %v212, 5
      %v920 = vsel %vm825, %v918, %v919
      %v921 = vrot.slane %v919, 4
      %v922 = vrot.slane %v213, 5
      %v923 = vsel %vm825, %v921, %v922
      %v924 = vrot.slane %v214, 5
      %v925 = vrot.slane %v924, 4
      %v926 = vrot.slane %v215, 5
      %v927 = vsel %vm825, %v925, %v926
      %v928 = vrot.slane %v926, 4
      %v929 = vrot.slane %v216, 5
      %v930 = vsel %vm825, %v928, %v929
      %v931 = vrot.slane %v217, 5
      %v932 = vrot.slane %v931, 4
      %v933 = vrot.slane %v218, 5
      %v934 = vsel %vm825, %v932, %v933
      %v935 = vrot.slane %v933, 4
      %v936 = vrot.slane %v219, 5
      %v937 = vsel %vm825, %v935, %v936
      %938 = vrot.lane.b32.xlu0 %v829, 8
      %v939 = vpop.permute.xlu0 %938
      %940 = vrot.lane.b32.xlu0 %v832, 8
      %v941 = vpop.permute.xlu0 %940
      %942 = vrot.lane.b32.xlu0 %v836, 8
      %v943 = vpop.permute.xlu0 %942
      %944 = vrot.lane.b32.xlu0 %v839, 8
      %v945 = vpop.permute.xlu0 %944
      %946 = vrot.lane.b32.xlu0 %v843, 8
      %v947 = vpop.permute.xlu0 %946
      %948 = vrot.lane.b32.xlu0 %v846, 8
      %v949 = vpop.permute.xlu0 %948
      %950 = vrot.lane.b32.xlu0 %v850, 8
      %v951 = vpop.permute.xlu0 %950
      %952 = vrot.lane.b32.xlu0 %v853, 8
      %v953 = vpop.permute.xlu0 %952
      %954 = vrot.lane.b32.xlu0 %v857, 8
      %v955 = vpop.permute.xlu0 %954
      %956 = vrot.lane.b32.xlu0 %v860, 8
      %v957 = vpop.permute.xlu0 %956
      %958 = vrot.lane.b32.xlu0 %v864, 8
      %v959 = vpop.permute.xlu0 %958
      %960 = vrot.lane.b32.xlu0 %v867, 8
      %v961 = vpop.permute.xlu0 %960
      %962 = vrot.lane.b32.xlu0 %v871, 8
      %v963 = vpop.permute.xlu0 %962
      %964 = vrot.lane.b32.xlu0 %v874, 8
      %v965 = vpop.permute.xlu0 %964
      %966 = vrot.lane.b32.xlu0 %v878, 8
      %v967 = vpop.permute.xlu0 %966
      %968 = vrot.lane.b32.xlu0 %v881, 8
      %v969 = vpop.permute.xlu0 %968
      %970 = vrot.lane.b32.xlu0 %v885, 8
      %v971 = vpop.permute.xlu0 %970
      %972 = vrot.lane.b32.xlu0 %v888, 8
      %v973 = vpop.permute.xlu0 %972
      %974 = vrot.lane.b32.xlu0 %v892, 8
      %v975 = vpop.permute.xlu0 %974
      %976 = vrot.lane.b32.xlu0 %v895, 8
      %v977 = vpop.permute.xlu0 %976
      %978 = vrot.lane.b32.xlu0 %v899, 8
      %v979 = vpop.permute.xlu0 %978
      %980 = vrot.lane.b32.xlu0 %v902, 8
      %v981 = vpop.permute.xlu0 %980
      %982 = vrot.lane.b32.xlu0 %v906, 8
      %v983 = vpop.permute.xlu0 %982
      %984 = vrot.lane.b32.xlu0 %v909, 8
      %v985 = vpop.permute.xlu0 %984
      %986 = vrot.lane.b32.xlu0 %v913, 8
      %v987 = vpop.permute.xlu0 %986
      %988 = vrot.lane.b32.xlu0 %v916, 8
      %v989 = vpop.permute.xlu0 %988
      %990 = vrot.lane.b32.xlu0 %v920, 8
      %v991 = vpop.permute.xlu0 %990
      %992 = vrot.lane.b32.xlu0 %v923, 8
      %v993 = vpop.permute.xlu0 %992
      %994 = vrot.lane.b32.xlu0 %v927, 8
      %v995 = vpop.permute.xlu0 %994
      %996 = vrot.lane.b32.xlu0 %v930, 8
      %v997 = vpop.permute.xlu0 %996
      %998 = vrot.lane.b32.xlu0 %v934, 8
      %v999 = vpop.permute.xlu0 %998
      %1000 = vrot.lane.b32.xlu0 %v937, 8
      %v1001 = vpop.permute.xlu0 %1000
      %vm1034 = vcmask 93248
      %1035 = vst.msk [vmem:[#allocation2] sm:$0xf] %vm1034, %v939
      %1036 = vst.msk [vmem:[#allocation2 + $0x4] sm:$0xf] %vm1034, %v941
      %1037 = vst.msk [vmem:[#allocation2 + $0x8] sm:$0xf] %vm1034, %v943
      %1038 = vst.msk [vmem:[#allocation2 + $0xc] sm:$0xf] %vm1034, %v945
      %1039 = vst.msk [vmem:[#allocation2 + $0x10] sm:$0xf] %vm1034, %v947
      %1040 = vst.msk [vmem:[#allocation2 + $0x14] sm:$0xf] %vm1034, %v949
      %1041 = vst.msk [vmem:[#allocation2 + $0x18] sm:$0xf] %vm1034, %v951
      %1042 = vst.msk [vmem:[#allocation2 + $0x1c] sm:$0xf] %vm1034, %v953
      %1043 = vst.msk [vmem:[#allocation2 + $0x20] sm:$0xf] %vm1034, %v955
      %1044 = vst.msk [vmem:[#allocation2 + $0x24] sm:$0xf] %vm1034, %v957
      %1045 = vst.msk [vmem:[#allocation2 + $0x28] sm:$0xf] %vm1034, %v959
      %1046 = vst.msk [vmem:[#allocation2 + $0x2c] sm:$0xf] %vm1034, %v961
      %1047 = vst.msk [vmem:[#allocation2 + $0x30] sm:$0xf] %vm1034, %v963
      %1048 = vst.msk [vmem:[#allocation2 + $0x34] sm:$0xf] %vm1034, %v965
      %1049 = vst.msk [vmem:[#allocation2 + $0x38] sm:$0xf] %vm1034, %v967
      %1050 = vst.msk [vmem:[#allocation2 + $0x3c] sm:$0xf] %vm1034, %v969
      %1051 = vst.msk [vmem:[#allocation2 + $0x40] sm:$0xf] %vm1034, %v971
      %1052 = vst.msk [vmem:[#allocation2 + $0x44] sm:$0xf] %vm1034, %v973
      %1053 = vst.msk [vmem:[#allocation2 + $0x48] sm:$0xf] %vm1034, %v975
      %1054 = vst.msk [vmem:[#allocation2 + $0x4c] sm:$0xf] %vm1034, %v977
      %1055 = vst.msk [vmem:[#allocation2 + $0x50] sm:$0xf] %vm1034, %v979
      %1056 = vst.msk [vmem:[#allocation2 + $0x54] sm:$0xf] %vm1034, %v981
      %1057 = vst.msk [vmem:[#allocation2 + $0x58] sm:$0xf] %vm1034, %v983
      %1058 = vst.msk [vmem:[#allocation2 + $0x5c] sm:$0xf] %vm1034, %v985
      %1059 = vst.msk [vmem:[#allocation2 + $0x60] sm:$0xf] %vm1034, %v987
      %1060 = vst.msk [vmem:[#allocation2 + $0x64] sm:$0xf] %vm1034, %v989
      %1061 = vst.msk [vmem:[#allocation2 + $0x68] sm:$0xf] %vm1034, %v991
      %1062 = vst.msk [vmem:[#allocation2 + $0x6c] sm:$0xf] %vm1034, %v993
      %1063 = vst.msk [vmem:[#allocation2 + $0x70] sm:$0xf] %vm1034, %v995
      %1064 = vst.msk [vmem:[#allocation2 + $0x74] sm:$0xf] %vm1034, %v997
      %1065 = vst.msk [vmem:[#allocation2 + $0x78] sm:$0xf] %vm1034, %v999
      %1066 = vst.msk [vmem:[#allocation2 + $0x7c] sm:$0xf] %vm1034, %v1001
      %1069 = vrot.lane.b32.xlu0 %v175, 12
      %v1070 = vpop.permute.xlu0 %1069
      %1071 = vrot.lane.b32.xlu0 %v176, 12
      %v1072 = vpop.permute.xlu0 %1071
      %1073 = vrot.lane.b32.xlu0 %v178, 12
      %v1074 = vpop.permute.xlu0 %1073
      %1075 = vrot.lane.b32.xlu0 %v179, 12
      %v1076 = vpop.permute.xlu0 %1075
      %1077 = vrot.lane.b32.xlu0 %v181, 12
      %v1078 = vpop.permute.xlu0 %1077
      %1079 = vrot.lane.b32.xlu0 %v182, 12
      %v1080 = vpop.permute.xlu0 %1079
      %1081 = vrot.lane.b32.xlu0 %v184, 12
      %v1082 = vpop.permute.xlu0 %1081
      %1083 = vrot.lane.b32.xlu0 %v185, 12
      %v1084 = vpop.permute.xlu0 %1083
      %1085 = vrot.lane.b32.xlu0 %v187, 12
      %v1086 = vpop.permute.xlu0 %1085
      %1087 = vrot.lane.b32.xlu0 %v188, 12
      %v1088 = vpop.permute.xlu0 %1087
      %1089 = vrot.lane.b32.xlu0 %v190, 12
      %v1090 = vpop.permute.xlu0 %1089
      %1091 = vrot.lane.b32.xlu0 %v191, 12
      %v1092 = vpop.permute.xlu0 %1091
      %1093 = vrot.lane.b32.xlu0 %v193, 12
      %v1094 = vpop.permute.xlu0 %1093
      %1095 = vrot.lane.b32.xlu0 %v194, 12
      %v1096 = vpop.permute.xlu0 %1095
      %1097 = vrot.lane.b32.xlu0 %v196, 12
      %v1098 = vpop.permute.xlu0 %1097
      %1099 = vrot.lane.b32.xlu0 %v197, 12
      %v1100 = vpop.permute.xlu0 %1099
      %1101 = vrot.lane.b32.xlu0 %v199, 12
      %v1102 = vpop.permute.xlu0 %1101
      %1103 = vrot.lane.b32.xlu0 %v200, 12
      %v1104 = vpop.permute.xlu0 %1103
      %1105 = vrot.lane.b32.xlu0 %v202, 12
      %v1106 = vpop.permute.xlu0 %1105
      %1107 = vrot.lane.b32.xlu0 %v203, 12
      %v1108 = vpop.permute.xlu0 %1107
      %1109 = vrot.lane.b32.xlu0 %v205, 12
      %v1110 = vpop.permute.xlu0 %1109
      %1111 = vrot.lane.b32.xlu0 %v206, 12
      %v1112 = vpop.permute.xlu0 %1111
      %1113 = vrot.lane.b32.xlu0 %v208, 12
      %v1114 = vpop.permute.xlu0 %1113
      %1115 = vrot.lane.b32.xlu0 %v209, 12
      %v1116 = vpop.permute.xlu0 %1115
      %1117 = vrot.lane.b32.xlu0 %v211, 12
      %v1118 = vpop.permute.xlu0 %1117
      %1119 = vrot.lane.b32.xlu0 %v212, 12
      %v1120 = vpop.permute.xlu0 %1119
      %1121 = vrot.lane.b32.xlu0 %v214, 12
      %v1122 = vpop.permute.xlu0 %1121
      %1123 = vrot.lane.b32.xlu0 %v215, 12
      %v1124 = vpop.permute.xlu0 %1123
      %1125 = vrot.lane.b32.xlu0 %v217, 12
      %v1126 = vpop.permute.xlu0 %1125
      %1127 = vrot.lane.b32.xlu0 %v218, 12
      %v1128 = vpop.permute.xlu0 %1127
      %1129 = vrot.lane.b32.xlu0 %v220, 12
      %v1130 = vpop.permute.xlu0 %1129
      %1131 = vrot.lane.b32.xlu0 %v221, 12
      %v1132 = vpop.permute.xlu0 %1131
      %vm1165 = vcmask 126048
      %1166 = vst.msk [vmem:[#allocation2] sm:$0xf] %vm1165, %v1070
      %1167 = vst.msk [vmem:[#allocation2 + $0x4] sm:$0xf] %vm1165, %v1072
      %1168 = vst.msk [vmem:[#allocation2 + $0x8] sm:$0xf] %vm1165, %v1074
      %1169 = vst.msk [vmem:[#allocation2 + $0xc] sm:$0xf] %vm1165, %v1076
      %1170 = vst.msk [vmem:[#allocation2 + $0x10] sm:$0xf] %vm1165, %v1078
      %1171 = vst.msk [vmem:[#allocation2 + $0x14] sm:$0xf] %vm1165, %v1080
      %1172 = vst.msk [vmem:[#allocation2 + $0x18] sm:$0xf] %vm1165, %v1082
      %1173 = vst.msk [vmem:[#allocation2 + $0x1c] sm:$0xf] %vm1165, %v1084
      %1174 = vst.msk [vmem:[#allocation2 + $0x20] sm:$0xf] %vm1165, %v1086
      %1175 = vst.msk [vmem:[#allocation2 + $0x24] sm:$0xf] %vm1165, %v1088
      %1176 = vst.msk [vmem:[#allocation2 + $0x28] sm:$0xf] %vm1165, %v1090
      %1177 = vst.msk [vmem:[#allocation2 + $0x2c] sm:$0xf] %vm1165, %v1092
      %1178 = vst.msk [vmem:[#allocation2 + $0x30] sm:$0xf] %vm1165, %v1094
      %1179 = vst.msk [vmem:[#allocation2 + $0x34] sm:$0xf] %vm1165, %v1096
      %1180 = vst.msk [vmem:[#allocation2 + $0x38] sm:$0xf] %vm1165, %v1098
      %1181 = vst.msk [vmem:[#allocation2 + $0x3c] sm:$0xf] %vm1165, %v1100
      %1182 = vst.msk [vmem:[#allocation2 + $0x40] sm:$0xf] %vm1165, %v1102
      %1183 = vst.msk [vmem:[#allocation2 + $0x44] sm:$0xf] %vm1165, %v1104
      %1184 = vst.msk [vmem:[#allocation2 + $0x48] sm:$0xf] %vm1165, %v1106
      %1185 = vst.msk [vmem:[#allocation2 + $0x4c] sm:$0xf] %vm1165, %v1108
      %1186 = vst.msk [vmem:[#allocation2 + $0x50] sm:$0xf] %vm1165, %v1110
      %1187 = vst.msk [vmem:[#allocation2 + $0x54] sm:$0xf] %vm1165, %v1112
      %1188 = vst.msk [vmem:[#allocation2 + $0x58] sm:$0xf] %vm1165, %v1114
      %1189 = vst.msk [vmem:[#allocation2 + $0x5c] sm:$0xf] %vm1165, %v1116
      %1190 = vst.msk [vmem:[#allocation2 + $0x60] sm:$0xf] %vm1165, %v1118
      %1191 = vst.msk [vmem:[#allocation2 + $0x64] sm:$0xf] %vm1165, %v1120
      %1192 = vst.msk [vmem:[#allocation2 + $0x68] sm:$0xf] %vm1165, %v1122
      %1193 = vst.msk [vmem:[#allocation2 + $0x6c] sm:$0xf] %vm1165, %v1124
      %1194 = vst.msk [vmem:[#allocation2 + $0x70] sm:$0xf] %vm1165, %v1126
      %1195 = vst.msk [vmem:[#allocation2 + $0x74] sm:$0xf] %vm1165, %v1128
      %1196 = vst.msk [vmem:[#allocation2 + $0x78] sm:$0xf] %vm1165, %v1130
      %1197 = vst.msk [vmem:[#allocation2 + $0x7c] sm:$0xf] %vm1165, %v1132
      %v1199 = vshrl.u32 %v220, 16
      %v1201 = vrot.slane %v1199, 4
      %v1202 = vshll.u32 %v220, 16
      %v1204 = vrot.slane %v1202, 5
      %v1205 = vor.u32 %v1201, %v1204
      %v1206 = vrot.slane %v1205, 4
      %v1208 = vshll.u32 %v221, 16
      %v1210 = vrot.slane %v1208, 5
      %v1211 = vsel %vm261, %v1206, %v1210
      %v1212 = vshrl.u32 %v221, 16
      %v1214 = vrot.slane %v1212, 4
      %v1215 = vor.u32 %v1214, %v1210
      %v1216 = vrot.slane %v1215, 4
      %v1218 = vshll.u32 %v222, 16
      %v1220 = vrot.slane %v1218, 5
      %v1221 = vsel %vm261, %v1216, %v1220
      %1222 = vrot.lane.b32.xlu0 %v299, 16
      %v1223 = vpop.permute.xlu0 %1222
      %1224 = vrot.lane.b32.xlu0 %v309, 16
      %v1225 = vpop.permute.xlu0 %1224
      %1226 = vrot.lane.b32.xlu0 %v323, 16
      %v1227 = vpop.permute.xlu0 %1226
      %1228 = vrot.lane.b32.xlu0 %v333, 16
      %v1229 = vpop.permute.xlu0 %1228
      %1230 = vrot.lane.b32.xlu0 %v347, 16
      %v1231 = vpop.permute.xlu0 %1230
      %1232 = vrot.lane.b32.xlu0 %v357, 16
      %v1233 = vpop.permute.xlu0 %1232
      %1234 = vrot.lane.b32.xlu0 %v371, 16
      %v1235 = vpop.permute.xlu0 %1234
      %1236 = vrot.lane.b32.xlu0 %v381, 16
      %v1237 = vpop.permute.xlu0 %1236
      %1238 = vrot.lane.b32.xlu0 %v395, 16
      %v1239 = vpop.permute.xlu0 %1238
      %1240 = vrot.lane.b32.xlu0 %v405, 16
      %v1241 = vpop.permute.xlu0 %1240
      %1242 = vrot.lane.b32.xlu0 %v419, 16
      %v1243 = vpop.permute.xlu0 %1242
      %1244 = vrot.lane.b32.xlu0 %v429, 16
      %v1245 = vpop.permute.xlu0 %1244
      %1246 = vrot.lane.b32.xlu0 %v443, 16
      %v1247 = vpop.permute.xlu0 %1246
      %1248 = vrot.lane.b32.xlu0 %v453, 16
      %v1249 = vpop.permute.xlu0 %1248
      %1250 = vrot.lane.b32.xlu0 %v467, 16
      %v1251 = vpop.permute.xlu0 %1250
      %1252 = vrot.lane.b32.xlu0 %v477, 16
      %v1253 = vpop.permute.xlu0 %1252
      %1254 = vrot.lane.b32.xlu0 %v491, 16
      %v1255 = vpop.permute.xlu0 %1254
      %1256 = vrot.lane.b32.xlu0 %v501, 16
      %v1257 = vpop.permute.xlu0 %1256
      %1258 = vrot.lane.b32.xlu0 %v515, 16
      %v1259 = vpop.permute.xlu0 %1258
      %1260 = vrot.lane.b32.xlu0 %v525, 16
      %v1261 = vpop.permute.xlu0 %1260
      %1262 = vrot.lane.b32.xlu0 %v539, 16
      %v1263 = vpop.permute.xlu0 %1262
      %1264 = vrot.lane.b32.xlu0 %v549, 16
      %v1265 = vpop.permute.xlu0 %1264
      %1266 = vrot.lane.b32.xlu0 %v563, 16
      %v1267 = vpop.permute.xlu0 %1266
      %1268 = vrot.lane.b32.xlu0 %v573, 16
      %v1269 = vpop.permute.xlu0 %1268
      %1270 = vrot.lane.b32.xlu0 %v587, 16
      %v1271 = vpop.permute.xlu0 %1270
      %1272 = vrot.lane.b32.xlu0 %v597, 16
      %v1273 = vpop.permute.xlu0 %1272
      %1274 = vrot.lane.b32.xlu0 %v611, 16
      %v1275 = vpop.permute.xlu0 %1274
      %1276 = vrot.lane.b32.xlu0 %v621, 16
      %v1277 = vpop.permute.xlu0 %1276
      %1278 = vrot.lane.b32.xlu0 %v635, 16
      %v1279 = vpop.permute.xlu0 %1278
      %1280 = vrot.lane.b32.xlu0 %v645, 16
      %v1281 = vpop.permute.xlu0 %1280
      %1282 = vrot.lane.b32.xlu0 %v1211, 16
      %v1283 = vpop.permute.xlu0 %1282
      %1284 = vrot.lane.b32.xlu0 %v1221, 16
      %v1285 = vpop.permute.xlu0 %1284
      %vm1318 = vcmask 158848
      %1319 = vst.msk [vmem:[#allocation2] sm:$0xf] %vm1318, %v1223
      %1320 = vst.msk [vmem:[#allocation2 + $0x4] sm:$0xf] %vm1318, %v1225
      %1321 = vst.msk [vmem:[#allocation2 + $0x8] sm:$0xf] %vm1318, %v1227
      %1322 = vst.msk [vmem:[#allocation2 + $0xc] sm:$0xf] %vm1318, %v1229
      %1323 = vst.msk [vmem:[#allocation2 + $0x10] sm:$0xf] %vm1318, %v1231
      %1324 = vst.msk [vmem:[#allocation2 + $0x14] sm:$0xf] %vm1318, %v1233
      %1325 = vst.msk [vmem:[#allocation2 + $0x18] sm:$0xf] %vm1318, %v1235
      %1326 = vst.msk [vmem:[#allocation2 + $0x1c] sm:$0xf] %vm1318, %v1237
      %1327 = vst.msk [vmem:[#allocation2 + $0x20] sm:$0xf] %vm1318, %v1239
      %1328 = vst.msk [vmem:[#allocation2 + $0x24] sm:$0xf] %vm1318, %v1241
      %1329 = vst.msk [vmem:[#allocation2 + $0x28] sm:$0xf] %vm1318, %v1243
      %1330 = vst.msk [vmem:[#allocation2 + $0x2c] sm:$0xf] %vm1318, %v1245
      %1331 = vst.msk [vmem:[#allocation2 + $0x30] sm:$0xf] %vm1318, %v1247
      %1332 = vst.msk [vmem:[#allocation2 + $0x34] sm:$0xf] %vm1318, %v1249
      %1333 = vst.msk [vmem:[#allocation2 + $0x38] sm:$0xf] %vm1318, %v1251
      %1334 = vst.msk [vmem:[#allocation2 + $0x3c] sm:$0xf] %vm1318, %v1253
      %1335 = vst.msk [vmem:[#allocation2 + $0x40] sm:$0xf] %vm1318, %v1255
      %1336 = vst.msk [vmem:[#allocation2 + $0x44] sm:$0xf] %vm1318, %v1257
      %1337 = vst.msk [vmem:[#allocation2 + $0x48] sm:$0xf] %vm1318, %v1259
      %1338 = vst.msk [vmem:[#allocation2 + $0x4c] sm:$0xf] %vm1318, %v1261
      %1339 = vst.msk [vmem:[#allocation2 + $0x50] sm:$0xf] %vm1318, %v1263
      %1340 = vst.msk [vmem:[#allocation2 + $0x54] sm:$0xf] %vm1318, %v1265
      %1341 = vst.msk [vmem:[#allocation2 + $0x58] sm:$0xf] %vm1318, %v1267
      %1342 = vst.msk [vmem:[#allocation2 + $0x5c] sm:$0xf] %vm1318, %v1269
      %1343 = vst.msk [vmem:[#allocation2 + $0x60] sm:$0xf] %vm1318, %v1271
      %1344 = vst.msk [vmem:[#allocation2 + $0x64] sm:$0xf] %vm1318, %v1273
      %1345 = vst.msk [vmem:[#allocation2 + $0x68] sm:$0xf] %vm1318, %v1275
      %1346 = vst.msk [vmem:[#allocation2 + $0x6c] sm:$0xf] %vm1318, %v1277
      %1347 = vst.msk [vmem:[#allocation2 + $0x70] sm:$0xf] %vm1318, %v1279
      %1348 = vst.msk [vmem:[#allocation2 + $0x74] sm:$0xf] %vm1318, %v1281
      %1349 = vst.msk [vmem:[#allocation2 + $0x78] sm:$0xf] %vm1318, %v1283
      %1350 = vst.msk [vmem:[#allocation2 + $0x7c] sm:$0xf] %vm1318, %v1285
      %v1352 = vrot.slane %v220, 5
      %v1353 = vrot.slane %v1352, 4
      %v1354 = vrot.slane %v221, 5
      %v1355 = vsel %vm825, %v1353, %v1354
      %v1356 = vrot.slane %v1354, 4
      %v1357 = vrot.slane %v222, 5
      %v1358 = vsel %vm825, %v1356, %v1357
      %1359 = vrot.lane.b32.xlu0 %v836, 20
      %v1360 = vpop.permute.xlu0 %1359
      %1361 = vrot.lane.b32.xlu0 %v839, 20
      %v1362 = vpop.permute.xlu0 %1361
      %1363 = vrot.lane.b32.xlu0 %v843, 20
      %v1364 = vpop.permute.xlu0 %1363
      %1365 = vrot.lane.b32.xlu0 %v846, 20
      %v1366 = vpop.permute.xlu0 %1365
      %1367 = vrot.lane.b32.xlu0 %v850, 20
      %v1368 = vpop.permute.xlu0 %1367
      %1369 = vrot.lane.b32.xlu0 %v853, 20
      %v1370 = vpop.permute.xlu0 %1369
      %1371 = vrot.lane.b32.xlu0 %v857, 20
      %v1372 = vpop.permute.xlu0 %1371
      %1373 = vrot.lane.b32.xlu0 %v860, 20
      %v1374 = vpop.permute.xlu0 %1373
      %1375 = vrot.lane.b32.xlu0 %v864, 20
      %v1376 = vpop.permute.xlu0 %1375
      %1377 = vrot.lane.b32.xlu0 %v867, 20
      %v1378 = vpop.permute.xlu0 %1377
      %1379 = vrot.lane.b32.xlu0 %v871, 20
      %v1380 = vpop.permute.xlu0 %1379
      %1381 = vrot.lane.b32.xlu0 %v874, 20
      %v1382 = vpop.permute.xlu0 %1381
      %1383 = vrot.lane.b32.xlu0 %v878, 20
      %v1384 = vpop.permute.xlu0 %1383
      %1385 = vrot.lane.b32.xlu0 %v881, 20
      %v1386 = vpop.permute.xlu0 %1385
      %1387 = vrot.lane.b32.xlu0 %v885, 20
      %v1388 = vpop.permute.xlu0 %1387
      %1389 = vrot.lane.b32.xlu0 %v888, 20
      %v1390 = vpop.permute.xlu0 %1389
      %1391 = vrot.lane.b32.xlu0 %v892, 20
      %v1392 = vpop.permute.xlu0 %1391
      %1393 = vrot.lane.b32.xlu0 %v895, 20
      %v1394 = vpop.permute.xlu0 %1393
      %1395 = vrot.lane.b32.xlu0 %v899, 20
      %v1396 = vpop.permute.xlu0 %1395
      %1397 = vrot.lane.b32.xlu0 %v902, 20
      %v1398 = vpop.permute.xlu0 %1397
      %1399 = vrot.lane.b32.xlu0 %v906, 20
      %v1400 = vpop.permute.xlu0 %1399
      %1401 = vrot.lane.b32.xlu0 %v909, 20
      %v1402 = vpop.permute.xlu0 %1401
      %1403 = vrot.lane.b32.xlu0 %v913, 20
      %v1404 = vpop.permute.xlu0 %1403
      %1405 = vrot.lane.b32.xlu0 %v916, 20
      %v1406 = vpop.permute.xlu0 %1405
      %1407 = vrot.lane.b32.xlu0 %v920, 20
      %v1408 = vpop.permute.xlu0 %1407
      %1409 = vrot.lane.b32.xlu0 %v923, 20
      %v1410 = vpop.permute.xlu0 %1409
      %1411 = vrot.lane.b32.xlu0 %v927, 20
      %v1412 = vpop.permute.xlu0 %1411
      %1413 = vrot.lane.b32.xlu0 %v930, 20
      %v1414 = vpop.permute.xlu0 %1413
      %1415 = vrot.lane.b32.xlu0 %v934, 20
      %v1416 = vpop.permute.xlu0 %1415
      %1417 = vrot.lane.b32.xlu0 %v937, 20
      %v1418 = vpop.permute.xlu0 %1417
      %1419 = vrot.lane.b32.xlu0 %v1355, 20
      %v1420 = vpop.permute.xlu0 %1419
      %1421 = vrot.lane.b32.xlu0 %v1358, 20
      %v1422 = vpop.permute.xlu0 %1421
      %vm1455 = vcmask 191648
      %1456 = vst.msk [vmem:[#allocation2] sm:$0xf] %vm1455, %v1360
      %1457 = vst.msk [vmem:[#allocation2 + $0x4] sm:$0xf] %vm1455, %v1362
      %1458 = vst.msk [vmem:[#allocation2 + $0x8] sm:$0xf] %vm1455, %v1364
      %1459 = vst.msk [vmem:[#allocation2 + $0xc] sm:$0xf] %vm1455, %v1366
      %1460 = vst.msk [vmem:[#allocation2 + $0x10] sm:$0xf] %vm1455, %v1368
      %1461 = vst.msk [vmem:[#allocation2 + $0x14] sm:$0xf] %vm1455, %v1370
      %1462 = vst.msk [vmem:[#allocation2 + $0x18] sm:$0xf] %vm1455, %v1372
      %1463 = vst.msk [vmem:[#allocation2 + $0x1c] sm:$0xf] %vm1455, %v1374
      %1464 = vst.msk [vmem:[#allocation2 + $0x20] sm:$0xf] %vm1455, %v1376
      %1465 = vst.msk [vmem:[#allocation2 + $0x24] sm:$0xf] %vm1455, %v1378
      %1466 = vst.msk [vmem:[#allocation2 + $0x28] sm:$0xf] %vm1455, %v1380
      %1467 = vst.msk [vmem:[#allocation2 + $0x2c] sm:$0xf] %vm1455, %v1382
      %1468 = vst.msk [vmem:[#allocation2 + $0x30] sm:$0xf] %vm1455, %v1384
      %1469 = vst.msk [vmem:[#allocation2 + $0x34] sm:$0xf] %vm1455, %v1386
      %1470 = vst.msk [vmem:[#allocation2 + $0x38] sm:$0xf] %vm1455, %v1388
      %1471 = vst.msk [vmem:[#allocation2 + $0x3c] sm:$0xf] %vm1455, %v1390
      %1472 = vst.msk [vmem:[#allocation2 + $0x40] sm:$0xf] %vm1455, %v1392
      %1473 = vst.msk [vmem:[#allocation2 + $0x44] sm:$0xf] %vm1455, %v1394
      %1474 = vst.msk [vmem:[#allocation2 + $0x48] sm:$0xf] %vm1455, %v1396
      %1475 = vst.msk [vmem:[#allocation2 + $0x4c] sm:$0xf] %vm1455, %v1398
      %1476 = vst.msk [vmem:[#allocation2 + $0x50] sm:$0xf] %vm1455, %v1400
      %1477 = vst.msk [vmem:[#allocation2 + $0x54] sm:$0xf] %vm1455, %v1402
      %1478 = vst.msk [vmem:[#allocation2 + $0x58] sm:$0xf] %vm1455, %v1404
      %1479 = vst.msk [vmem:[#allocation2 + $0x5c] sm:$0xf] %vm1455, %v1406
      %1480 = vst.msk [vmem:[#allocation2 + $0x60] sm:$0xf] %vm1455, %v1408
      %1481 = vst.msk [vmem:[#allocation2 + $0x64] sm:$0xf] %vm1455, %v1410
      %1482 = vst.msk [vmem:[#allocation2 + $0x68] sm:$0xf] %vm1455, %v1412
      %1483 = vst.msk [vmem:[#allocation2 + $0x6c] sm:$0xf] %vm1455, %v1414
      %1484 = vst.msk [vmem:[#allocation2 + $0x70] sm:$0xf] %vm1455, %v1416
      %1485 = vst.msk [vmem:[#allocation2 + $0x74] sm:$0xf] %vm1455, %v1418
      %1486 = vst.msk [vmem:[#allocation2 + $0x78] sm:$0xf] %vm1455, %v1420
      %1487 = vst.msk [vmem:[#allocation2 + $0x7c] sm:$0xf] %vm1455, %v1422
      %1490 = vrot.lane.b32.xlu0 %v178, 24
      %v1491 = vpop.permute.xlu0 %1490
      %1492 = vrot.lane.b32.xlu0 %v179, 24
      %v1493 = vpop.permute.xlu0 %1492
      %1494 = vrot.lane.b32.xlu0 %v181, 24
      %v1495 = vpop.permute.xlu0 %1494
      %1496 = vrot.lane.b32.xlu0 %v182, 24
      %v1497 = vpop.permute.xlu0 %1496
      %1498 = vrot.lane.b32.xlu0 %v184, 24
      %v1499 = vpop.permute.xlu0 %1498
      %1500 = vrot.lane.b32.xlu0 %v185, 24
      %v1501 = vpop.permute.xlu0 %1500
      %1502 = vrot.lane.b32.xlu0 %v187, 24
      %v1503 = vpop.permute.xlu0 %1502
      %1504 = vrot.lane.b32.xlu0 %v188, 24
      %v1505 = vpop.permute.xlu0 %1504
      %1506 = vrot.lane.b32.xlu0 %v190, 24
      %v1507 = vpop.permute.xlu0 %1506
      %1508 = vrot.lane.b32.xlu0 %v191, 24
      %v1509 = vpop.permute.xlu0 %1508
      %1510 = vrot.lane.b32.xlu0 %v193, 24
      %v1511 = vpop.permute.xlu0 %1510
      %1512 = vrot.lane.b32.xlu0 %v194, 24
      %v1513 = vpop.permute.xlu0 %1512
      %1514 = vrot.lane.b32.xlu0 %v196, 24
      %v1515 = vpop.permute.xlu0 %1514
      %1516 = vrot.lane.b32.xlu0 %v197, 24
      %v1517 = vpop.permute.xlu0 %1516
      %1518 = vrot.lane.b32.xlu0 %v199, 24
      %v1519 = vpop.permute.xlu0 %1518
      %1520 = vrot.lane.b32.xlu0 %v200, 24
      %v1521 = vpop.permute.xlu0 %1520
      %1522 = vrot.lane.b32.xlu0 %v202, 24
      %v1523 = vpop.permute.xlu0 %1522
      %1524 = vrot.lane.b32.xlu0 %v203, 24
      %v1525 = vpop.permute.xlu0 %1524
      %1526 = vrot.lane.b32.xlu0 %v205, 24
      %v1527 = vpop.permute.xlu0 %1526
      %1528 = vrot.lane.b32.xlu0 %v206, 24
      %v1529 = vpop.permute.xlu0 %1528
      %1530 = vrot.lane.b32.xlu0 %v208, 24
      %v1531 = vpop.permute.xlu0 %1530
      %1532 = vrot.lane.b32.xlu0 %v209, 24
      %v1533 = vpop.permute.xlu0 %1532
      %1534 = vrot.lane.b32.xlu0 %v211, 24
      %v1535 = vpop.permute.xlu0 %1534
      %1536 = vrot.lane.b32.xlu0 %v212, 24
      %v1537 = vpop.permute.xlu0 %1536
      %1538 = vrot.lane.b32.xlu0 %v214, 24
      %v1539 = vpop.permute.xlu0 %1538
      %1540 = vrot.lane.b32.xlu0 %v215, 24
      %v1541 = vpop.permute.xlu0 %1540
      %1542 = vrot.lane.b32.xlu0 %v217, 24
      %v1543 = vpop.permute.xlu0 %1542
      %1544 = vrot.lane.b32.xlu0 %v218, 24
      %v1545 = vpop.permute.xlu0 %1544
      %1546 = vrot.lane.b32.xlu0 %v220, 24
      %v1547 = vpop.permute.xlu0 %1546
      %1548 = vrot.lane.b32.xlu0 %v221, 24
      %v1549 = vpop.permute.xlu0 %1548
      %1550 = vrot.lane.b32.xlu0 %v223, 24
      %v1551 = vpop.permute.xlu0 %1550
      %1552 = vrot.lane.b32.xlu0 %v224, 24
      %v1553 = vpop.permute.xlu0 %1552
      %vm1586 = vcmask 224448
      %1587 = vst.msk [vmem:[#allocation2] sm:$0xf] %vm1586, %v1491
      %1588 = vst.msk [vmem:[#allocation2 + $0x4] sm:$0xf] %vm1586, %v1493
      %1589 = vst.msk [vmem:[#allocation2 + $0x8] sm:$0xf] %vm1586, %v1495
      %1590 = vst.msk [vmem:[#allocation2 + $0xc] sm:$0xf] %vm1586, %v1497
      %1591 = vst.msk [vmem:[#allocation2 + $0x10] sm:$0xf] %vm1586, %v1499
      %1592 = vst.msk [vmem:[#allocation2 + $0x14] sm:$0xf] %vm1586, %v1501
      %1593 = vst.msk [vmem:[#allocation2 + $0x18] sm:$0xf] %vm1586, %v1503
      %1594 = vst.msk [vmem:[#allocation2 + $0x1c] sm:$0xf] %vm1586, %v1505
      %1595 = vst.msk [vmem:[#allocation2 + $0x20] sm:$0xf] %vm1586, %v1507
      %1596 = vst.msk [vmem:[#allocation2 + $0x24] sm:$0xf] %vm1586, %v1509
      %1597 = vst.msk [vmem:[#allocation2 + $0x28] sm:$0xf] %vm1586, %v1511
      %1598 = vst.msk [vmem:[#allocation2 + $0x2c] sm:$0xf] %vm1586, %v1513
      %1599 = vst.msk [vmem:[#allocation2 + $0x30] sm:$0xf] %vm1586, %v1515
      %1600 = vst.msk [vmem:[#allocation2 + $0x34] sm:$0xf] %vm1586, %v1517
      %1601 = vst.msk [vmem:[#allocation2 + $0x38] sm:$0xf] %vm1586, %v1519
      %1602 = vst.msk [vmem:[#allocation2 + $0x3c] sm:$0xf] %vm1586, %v1521
      %1603 = vst.msk [vmem:[#allocation2 + $0x40] sm:$0xf] %vm1586, %v1523
      %1604 = vst.msk [vmem:[#allocation2 + $0x44] sm:$0xf] %vm1586, %v1525
      %1605 = vst.msk [vmem:[#allocation2 + $0x48] sm:$0xf] %vm1586, %v1527
      %1606 = vst.msk [vmem:[#allocation2 + $0x4c] sm:$0xf] %vm1586, %v1529
      %1607 = vst.msk [vmem:[#allocation2 + $0x50] sm:$0xf] %vm1586, %v1531
      %1608 = vst.msk [vmem:[#allocation2 + $0x54] sm:$0xf] %vm1586, %v1533
      %1609 = vst.msk [vmem:[#allocation2 + $0x58] sm:$0xf] %vm1586, %v1535
      %1610 = vst.msk [vmem:[#allocation2 + $0x5c] sm:$0xf] %vm1586, %v1537
      %1611 = vst.msk [vmem:[#allocation2 + $0x60] sm:$0xf] %vm1586, %v1539
      %1612 = vst.msk [vmem:[#allocation2 + $0x64] sm:$0xf] %vm1586, %v1541
      %1613 = vst.msk [vmem:[#allocation2 + $0x68] sm:$0xf] %vm1586, %v1543
      %1614 = vst.msk [vmem:[#allocation2 + $0x6c] sm:$0xf] %vm1586, %v1545
      %1615 = vst.msk [vmem:[#allocation2 + $0x70] sm:$0xf] %vm1586, %v1547
      %1616 = vst.msk [vmem:[#allocation2 + $0x74] sm:$0xf] %vm1586, %v1549
      %1617 = vst.msk [vmem:[#allocation2 + $0x78] sm:$0xf] %vm1586, %v1551
      %1618 = vst.msk [vmem:[#allocation2 + $0x7c] sm:$0xf] %vm1586, %v1553
      %v1620 = vshrl.u32 %v223, 16
      %v1622 = vrot.slane %v1620, 4
      %v1623 = vshll.u32 %v223, 16
      %v1625 = vrot.slane %v1623, 5
      %v1626 = vor.u32 %v1622, %v1625
      %v1627 = vrot.slane %v1626, 4
      %v1629 = vshll.u32 %v224, 16
      %v1631 = vrot.slane %v1629, 5
      %v1632 = vsel %vm261, %v1627, %v1631
      %v1633 = vshrl.u32 %v224, 16
      %v1635 = vrot.slane %v1633, 4
      %v1636 = vor.u32 %v1635, %v1631
      %v1637 = vrot.slane %v1636, 4
      %v1639 = vshll.u32 %v225, 16
      %v1641 = vrot.slane %v1639, 5
      %v1642 = vsel %vm261, %v1637, %v1641
      %1643 = vrot.lane.b32.xlu0 %v323, 28
      %v1644 = vpop.permute.xlu0 %1643
      %1645 = vrot.lane.b32.xlu0 %v333, 28
      %v1646 = vpop.permute.xlu0 %1645
      %1647 = vrot.lane.b32.xlu0 %v347, 28
      %v1648 = vpop.permute.xlu0 %1647
      %1649 = vrot.lane.b32.xlu0 %v357, 28
      %v1650 = vpop.permute.xlu0 %1649
      %1651 = vrot.lane.b32.xlu0 %v371, 28
      %v1652 = vpop.permute.xlu0 %1651
      %1653 = vrot.lane.b32.xlu0 %v381, 28
      %v1654 = vpop.permute.xlu0 %1653
      %1655 = vrot.lane.b32.xlu0 %v395, 28
      %v1656 = vpop.permute.xlu0 %1655
      %1657 = vrot.lane.b32.xlu0 %v405, 28
      %v1658 = vpop.permute.xlu0 %1657
      %1659 = vrot.lane.b32.xlu0 %v419, 28
      %v1660 = vpop.permute.xlu0 %1659
      %1661 = vrot.lane.b32.xlu0 %v429, 28
      %v1662 = vpop.permute.xlu0 %1661
      %1663 = vrot.lane.b32.xlu0 %v443, 28
      %v1664 = vpop.permute.xlu0 %1663
      %1665 = vrot.lane.b32.xlu0 %v453, 28
      %v1666 = vpop.permute.xlu0 %1665
      %1667 = vrot.lane.b32.xlu0 %v467, 28
      %v1668 = vpop.permute.xlu0 %1667
      %1669 = vrot.lane.b32.xlu0 %v477, 28
      %v1670 = vpop.permute.xlu0 %1669
      %1671 = vrot.lane.b32.xlu0 %v491, 28
      %v1672 = vpop.permute.xlu0 %1671
      %1673 = vrot.lane.b32.xlu0 %v501, 28
      %v1674 = vpop.permute.xlu0 %1673
      %1675 = vrot.lane.b32.xlu0 %v515, 28
      %v1676 = vpop.permute.xlu0 %1675
      %1677 = vrot.lane.b32.xlu0 %v525, 28
      %v1678 = vpop.permute.xlu0 %1677
      %1679 = vrot.lane.b32.xlu0 %v539, 28
      %v1680 = vpop.permute.xlu0 %1679
      %1681 = vrot.lane.b32.xlu0 %v549, 28
      %v1682 = vpop.permute.xlu0 %1681
      %1683 = vrot.lane.b32.xlu0 %v563, 28
      %v1684 = vpop.permute.xlu0 %1683
      %1685 = vrot.lane.b32.xlu0 %v573, 28
      %v1686 = vpop.permute.xlu0 %1685
      %1687 = vrot.lane.b32.xlu0 %v587, 28
      %v1688 = vpop.permute.xlu0 %1687
      %1689 = vrot.lane.b32.xlu0 %v597, 28
      %v1690 = vpop.permute.xlu0 %1689
      %1691 = vrot.lane.b32.xlu0 %v611, 28
      %v1692 = vpop.permute.xlu0 %1691
      %1693 = vrot.lane.b32.xlu0 %v621, 28
      %v1694 = vpop.permute.xlu0 %1693
      %1695 = vrot.lane.b32.xlu0 %v635, 28
      %v1696 = vpop.permute.xlu0 %1695
      %1697 = vrot.lane.b32.xlu0 %v645, 28
      %v1698 = vpop.permute.xlu0 %1697
      %1699 = vrot.lane.b32.xlu0 %v1211, 28
      %v1700 = vpop.permute.xlu0 %1699
      %1701 = vrot.lane.b32.xlu0 %v1221, 28
      %v1702 = vpop.permute.xlu0 %1701
      %1703 = vrot.lane.b32.xlu0 %v1632, 28
      %v1704 = vpop.permute.xlu0 %1703
      %1705 = vrot.lane.b32.xlu0 %v1642, 28
      %v1706 = vpop.permute.xlu0 %1705
      %vm1739 = vcmask 257248
      %1740 = vst.msk [vmem:[#allocation2] sm:$0xf] %vm1739, %v1644
      %1741 = vst.msk [vmem:[#allocation2 + $0x4] sm:$0xf] %vm1739, %v1646
      %1742 = vst.msk [vmem:[#allocation2 + $0x8] sm:$0xf] %vm1739, %v1648
      %1743 = vst.msk [vmem:[#allocation2 + $0xc] sm:$0xf] %vm1739, %v1650
      %1744 = vst.msk [vmem:[#allocation2 + $0x10] sm:$0xf] %vm1739, %v1652
      %1745 = vst.msk [vmem:[#allocation2 + $0x14] sm:$0xf] %vm1739, %v1654
      %1746 = vst.msk [vmem:[#allocation2 + $0x18] sm:$0xf] %vm1739, %v1656
      %1747 = vst.msk [vmem:[#allocation2 + $0x1c] sm:$0xf] %vm1739, %v1658
      %1748 = vst.msk [vmem:[#allocation2 + $0x20] sm:$0xf] %vm1739, %v1660
      %1749 = vst.msk [vmem:[#allocation2 + $0x24] sm:$0xf] %vm1739, %v1662
      %1750 = vst.msk [vmem:[#allocation2 + $0x28] sm:$0xf] %vm1739, %v1664
      %1751 = vst.msk [vmem:[#allocation2 + $0x2c] sm:$0xf] %vm1739, %v1666
      %1752 = vst.msk [vmem:[#allocation2 + $0x30] sm:$0xf] %vm1739, %v1668
      %1753 = vst.msk [vmem:[#allocation2 + $0x34] sm:$0xf] %vm1739, %v1670
      %1754 = vst.msk [vmem:[#allocation2 + $0x38] sm:$0xf] %vm1739, %v1672
      %1755 = vst.msk [vmem:[#allocation2 + $0x3c] sm:$0xf] %vm1739, %v1674
      %1756 = vst.msk [vmem:[#allocation2 + $0x40] sm:$0xf] %vm1739, %v1676
      %1757 = vst.msk [vmem:[#allocation2 + $0x44] sm:$0xf] %vm1739, %v1678
      %1758 = vst.msk [vmem:[#allocation2 + $0x48] sm:$0xf] %vm1739, %v1680
      %1759 = vst.msk [vmem:[#allocation2 + $0x4c] sm:$0xf] %vm1739, %v1682
      %1760 = vst.msk [vmem:[#allocation2 + $0x50] sm:$0xf] %vm1739, %v1684
      %1761 = vst.msk [vmem:[#allocation2 + $0x54] sm:$0xf] %vm1739, %v1686
      %1762 = vst.msk [vmem:[#allocation2 + $0x58] sm:$0xf] %vm1739, %v1688
      %1763 = vst.msk [vmem:[#allocation2 + $0x5c] sm:$0xf] %vm1739, %v1690
      %1764 = vst.msk [vmem:[#allocation2 + $0x60] sm:$0xf] %vm1739, %v1692
      %1765 = vst.msk [vmem:[#allocation2 + $0x64] sm:$0xf] %vm1739, %v1694
      %1766 = vst.msk [vmem:[#allocation2 + $0x68] sm:$0xf] %vm1739, %v1696
      %1767 = vst.msk [vmem:[#allocation2 + $0x6c] sm:$0xf] %vm1739, %v1698
      %1768 = vst.msk [vmem:[#allocation2 + $0x70] sm:$0xf] %vm1739, %v1700
      %1769 = vst.msk [vmem:[#allocation2 + $0x74] sm:$0xf] %vm1739, %v1702
      %1770 = vst.msk [vmem:[#allocation2 + $0x78] sm:$0xf] %vm1739, %v1704
      %1771 = vst.msk [vmem:[#allocation2 + $0x7c] sm:$0xf] %vm1739, %v1706
      %v1773 = vrot.slane %v223, 5
      %v1774 = vrot.slane %v1773, 4
      %v1775 = vrot.slane %v224, 5
      %v1776 = vsel %vm825, %v1774, %v1775
      %v1777 = vrot.slane %v1775, 4
      %v1778 = vrot.slane %v225, 5
      %v1779 = vsel %vm825, %v1777, %v1778
      %1780 = vrot.lane.b32.xlu0 %v843, 32
      %v1781 = vpop.permute.xlu0 %1780
      %1782 = vrot.lane.b32.xlu0 %v846, 32
      %v1783 = vpop.permute.xlu0 %1782
      %1784 = vrot.lane.b32.xlu0 %v850, 32
      %v1785 = vpop.permute.xlu0 %1784
      %1786 = vrot.lane.b32.xlu0 %v853, 32
      %v1787 = vpop.permute.xlu0 %1786
      %1788 = vrot.lane.b32.xlu0 %v857, 32
      %v1789 = vpop.permute.xlu0 %1788
      %1790 = vrot.lane.b32.xlu0 %v860, 32
      %v1791 = vpop.permute.xlu0 %1790
      %1792 = vrot.lane.b32.xlu0 %v864, 32
      %v1793 = vpop.permute.xlu0 %1792
      %1794 = vrot.lane.b32.xlu0 %v867, 32
      %v1795 = vpop.permute.xlu0 %1794
      %1796 = vrot.lane.b32.xlu0 %v871, 32
      %v1797 = vpop.permute.xlu0 %1796
      %1798 = vrot.lane.b32.xlu0 %v874, 32
      %v1799 = vpop.permute.xlu0 %1798
      %1800 = vrot.lane.b32.xlu0 %v878, 32
      %v1801 = vpop.permute.xlu0 %1800
      %1802 = vrot.lane.b32.xlu0 %v881, 32
      %v1803 = vpop.permute.xlu0 %1802
      %1804 = vrot.lane.b32.xlu0 %v885, 32
      %v1805 = vpop.permute.xlu0 %1804
      %1806 = vrot.lane.b32.xlu0 %v888, 32
      %v1807 = vpop.permute.xlu0 %1806
      %1808 = vrot.lane.b32.xlu0 %v892, 32
      %v1809 = vpop.permute.xlu0 %1808
      %1810 = vrot.lane.b32.xlu0 %v895, 32
      %v1811 = vpop.permute.xlu0 %1810
      %1812 = vrot.lane.b32.xlu0 %v899, 32
      %v1813 = vpop.permute.xlu0 %1812
      %1814 = vrot.lane.b32.xlu0 %v902, 32
      %v1815 = vpop.permute.xlu0 %1814
      %1816 = vrot.lane.b32.xlu0 %v906, 32
      %v1817 = vpop.permute.xlu0 %1816
      %1818 = vrot.lane.b32.xlu0 %v909, 32
      %v1819 = vpop.permute.xlu0 %1818
      %1820 = vrot.lane.b32.xlu0 %v913, 32
      %v1821 = vpop.permute.xlu0 %1820
      %1822 = vrot.lane.b32.xlu0 %v916, 32
      %v1823 = vpop.permute.xlu0 %1822
      %1824 = vrot.lane.b32.xlu0 %v920, 32
      %v1825 = vpop.permute.xlu0 %1824
      %1826 = vrot.lane.b32.xlu0 %v923, 32
      %v1827 = vpop.permute.xlu0 %1826
      %1828 = vrot.lane.b32.xlu0 %v927, 32
      %v1829 = vpop.permute.xlu0 %1828
      %1830 = vrot.lane.b32.xlu0 %v930, 32
      %v1831 = vpop.permute.xlu0 %1830
      %1832 = vrot.lane.b32.xlu0 %v934, 32
      %v1833 = vpop.permute.xlu0 %1832
      %1834 = vrot.lane.b32.xlu0 %v937, 32
      %v1835 = vpop.permute.xlu0 %1834
      %1836 = vrot.lane.b32.xlu0 %v1355, 32
      %v1837 = vpop.permute.xlu0 %1836
      %1838 = vrot.lane.b32.xlu0 %v1358, 32
      %v1839 = vpop.permute.xlu0 %1838
      %1840 = vrot.lane.b32.xlu0 %v1776, 32
      %v1841 = vpop.permute.xlu0 %1840
      %1842 = vrot.lane.b32.xlu0 %v1779, 32
      %v1843 = vpop.permute.xlu0 %1842
      %vm1876 = vcmask 290048
      %1877 = vst.msk [vmem:[#allocation2] sm:$0xf] %vm1876, %v1781
      %1878 = vst.msk [vmem:[#allocation2 + $0x4] sm:$0xf] %vm1876, %v1783
      %1879 = vst.msk [vmem:[#allocation2 + $0x8] sm:$0xf] %vm1876, %v1785
      %1880 = vst.msk [vmem:[#allocation2 + $0xc] sm:$0xf] %vm1876, %v1787
      %1881 = vst.msk [vmem:[#allocation2 + $0x10] sm:$0xf] %vm1876, %v1789
      %1882 = vst.msk [vmem:[#allocation2 + $0x14] sm:$0xf] %vm1876, %v1791
      %1883 = vst.msk [vmem:[#allocation2 + $0x18] sm:$0xf] %vm1876, %v1793
      %1884 = vst.msk [vmem:[#allocation2 + $0x1c] sm:$0xf] %vm1876, %v1795
      %1885 = vst.msk [vmem:[#allocation2 + $0x20] sm:$0xf] %vm1876, %v1797
      %1886 = vst.msk [vmem:[#allocation2 + $0x24] sm:$0xf] %vm1876, %v1799
      %1887 = vst.msk [vmem:[#allocation2 + $0x28] sm:$0xf] %vm1876, %v1801
      %1888 = vst.msk [vmem:[#allocation2 + $0x2c] sm:$0xf] %vm1876, %v1803
      %1889 = vst.msk [vmem:[#allocation2 + $0x30] sm:$0xf] %vm1876, %v1805
      %1890 = vst.msk [vmem:[#allocation2 + $0x34] sm:$0xf] %vm1876, %v1807
      %1891 = vst.msk [vmem:[#allocation2 + $0x38] sm:$0xf] %vm1876, %v1809
      %1892 = vst.msk [vmem:[#allocation2 + $0x3c] sm:$0xf] %vm1876, %v1811
      %1893 = vst.msk [vmem:[#allocation2 + $0x40] sm:$0xf] %vm1876, %v1813
      %1894 = vst.msk [vmem:[#allocation2 + $0x44] sm:$0xf] %vm1876, %v1815
      %1895 = vst.msk [vmem:[#allocation2 + $0x48] sm:$0xf] %vm1876, %v1817
      %1896 = vst.msk [vmem:[#allocation2 + $0x4c] sm:$0xf] %vm1876, %v1819
      %1897 = vst.msk [vmem:[#allocation2 + $0x50] sm:$0xf] %vm1876, %v1821
      %1898 = vst.msk [vmem:[#allocation2 + $0x54] sm:$0xf] %vm1876, %v1823
      %1899 = vst.msk [vmem:[#allocation2 + $0x58] sm:$0xf] %vm1876, %v1825
      %1900 = vst.msk [vmem:[#allocation2 + $0x5c] sm:$0xf] %vm1876, %v1827
      %1901 = vst.msk [vmem:[#allocation2 + $0x60] sm:$0xf] %vm1876, %v1829
      %1902 = vst.msk [vmem:[#allocation2 + $0x64] sm:$0xf] %vm1876, %v1831
      %1903 = vst.msk [vmem:[#allocation2 + $0x68] sm:$0xf] %vm1876, %v1833
      %1904 = vst.msk [vmem:[#allocation2 + $0x6c] sm:$0xf] %vm1876, %v1835
      %1905 = vst.msk [vmem:[#allocation2 + $0x70] sm:$0xf] %vm1876, %v1837
      %1906 = vst.msk [vmem:[#allocation2 + $0x74] sm:$0xf] %vm1876, %v1839
      %1907 = vst.msk [vmem:[#allocation2 + $0x78] sm:$0xf] %vm1876, %v1841
      %1908 = vst.msk [vmem:[#allocation2 + $0x7c] sm:$0xf] %vm1876, %v1843
      %v1909 = vld [vmem:[#allocation2] sm:$0xf]
      %v1910 = vld [vmem:[#allocation2 + $0x4] sm:$0xf]
      %v1911 = vld [vmem:[#allocation2 + $0x8] sm:$0xf]
      %v1912 = vld [vmem:[#allocation2 + $0xc] sm:$0xf]
      %v1913 = vld [vmem:[#allocation2 + $0x10] sm:$0xf]
      %v1914 = vld [vmem:[#allocation2 + $0x14] sm:$0xf]
      %v1915 = vld [vmem:[#allocation2 + $0x18] sm:$0xf]
      %v1916 = vld [vmem:[#allocation2 + $0x1c] sm:$0xf]
      %v1917 = vld [vmem:[#allocation2 + $0x20] sm:$0xf]
      %v1918 = vld [vmem:[#allocation2 + $0x24] sm:$0xf]
      %v1919 = vld [vmem:[#allocation2 + $0x28] sm:$0xf]
      %v1920 = vld [vmem:[#allocation2 + $0x2c] sm:$0xf]
      %v1921 = vld [vmem:[#allocation2 + $0x30] sm:$0xf]
      %v1922 = vld [vmem:[#allocation2 + $0x34] sm:$0xf]
      %v1923 = vld [vmem:[#allocation2 + $0x38] sm:$0xf]
      %v1924 = vld [vmem:[#allocation2 + $0x3c] sm:$0xf]
      %v1925 = vld [vmem:[#allocation2 + $0x40] sm:$0xf]
      %v1926 = vld [vmem:[#allocation2 + $0x44] sm:$0xf]
      %v1927 = vld [vmem:[#allocation2 + $0x48] sm:$0xf]
      %v1928 = vld [vmem:[#allocation2 + $0x4c] sm:$0xf]
      %v1929 = vld [vmem:[#allocation2 + $0x50] sm:$0xf]
      %v1930 = vld [vmem:[#allocation2 + $0x54] sm:$0xf]
      %v1931 = vld [vmem:[#allocation2 + $0x58] sm:$0xf]
      %v1932 = vld [vmem:[#allocation2 + $0x5c] sm:$0xf]
      %v1933 = vld [vmem:[#allocation2 + $0x60] sm:$0xf]
      %v1934 = vld [vmem:[#allocation2 + $0x64] sm:$0xf]
      %v1935 = vld [vmem:[#allocation2 + $0x68] sm:$0xf]
      %v1936 = vld [vmem:[#allocation2 + $0x6c] sm:$0xf]
      %v1937 = vld [vmem:[#allocation2 + $0x70] sm:$0xf]
      %v1938 = vld [vmem:[#allocation2 + $0x74] sm:$0xf]
      %v1939 = vld [vmem:[#allocation2 + $0x78] sm:$0xf]
      %v1940 = vld [vmem:[#allocation2 + $0x7c] sm:$0xf]
      %v1941 = vld [vmem:[%s1] sm:$0xf]
      %v1942 = vld [vmem:[%s1 + $0x4] sm:$0xf]
      %v1943 = vld [vmem:[%s1 + $0x8] sm:$0xf]
      %v1944 = vld [vmem:[%s1 + $0xc] sm:$0xf]
      %v1945 = vld [vmem:[%s1 + $0x10] sm:$0x3]
      %v1946 = vld [vmem:[%s2] sm:$0x1]
      %v1948 = vlaneseq
      %v1949 = vshrl.u32 %v1948, 7
      %v1950 = vsub.s32 0, %v1949
      %v1951 = vrot.slane %v1946, %v1950
      %v1985 = vunpack.c.l.b16 %v1909
      %v1986 = vunpack.c.l.b16 %v1910
      %v1987 = vunpack.c.l.b16 %v1911
      %v1988 = vunpack.c.l.b16 %v1912
      %v1989 = vunpack.c.l.b16 %v1913
      %v1990 = vunpack.c.l.b16 %v1914
      %v1991 = vunpack.c.l.b16 %v1915
      %v1992 = vunpack.c.l.b16 %v1916
      %v1993 = vunpack.c.l.b16 %v1917
      %v1994 = vunpack.c.l.b16 %v1918
      %v1995 = vunpack.c.l.b16 %v1919
      %v1996 = vunpack.c.l.b16 %v1920
      %v1997 = vunpack.c.l.b16 %v1921
      %v1998 = vunpack.c.l.b16 %v1922
      %v1999 = vunpack.c.l.b16 %v1923
      %v2000 = vunpack.c.l.b16 %v1924
      %v2001 = vunpack.c.l.b16 %v1925
      %v2002 = vunpack.c.l.b16 %v1926
      %v2003 = vunpack.c.l.b16 %v1927
      %v2004 = vunpack.c.l.b16 %v1928
      %v2005 = vunpack.c.l.b16 %v1929
      %v2006 = vunpack.c.l.b16 %v1930
      %v2007 = vunpack.c.l.b16 %v1931
      %v2008 = vunpack.c.l.b16 %v1932
      %v2009 = vunpack.c.l.b16 %v1933
      %v2010 = vunpack.c.l.b16 %v1934
      %v2011 = vunpack.c.l.b16 %v1935
      %v2012 = vunpack.c.l.b16 %v1936
      %v2013 = vunpack.c.l.b16 %v1937
      %v2014 = vunpack.c.l.b16 %v1938
      %v2015 = vunpack.c.l.b16 %v1939
      %v2016 = vunpack.c.l.b16 %v1940
      %v2017 = vpack.c.b16 %v1986, %v1985
      %v2018 = vpack.c.b16 %v1988, %v1987
      %v2019 = vpack.c.b16 %v1990, %v1989
      %v2020 = vpack.c.b16 %v1992, %v1991
      %v2021 = vpack.c.b16 %v1994, %v1993
      %v2022 = vpack.c.b16 %v1996, %v1995
      %v2023 = vpack.c.b16 %v1998, %v1997
      %v2024 = vpack.c.b16 %v2000, %v1999
      %v2025 = vpack.c.b16 %v2002, %v2001
      %v2026 = vpack.c.b16 %v2004, %v2003
      %v2027 = vpack.c.b16 %v2006, %v2005
      %v2028 = vpack.c.b16 %v2008, %v2007
      %v2029 = vpack.c.b16 %v2010, %v2009
      %v2030 = vpack.c.b16 %v2012, %v2011
      %v2031 = vpack.c.b16 %v2014, %v2013
      %v2032 = vpack.c.b16 %v2016, %v2015
      %v2038 = vunpack.c.l.b16 %v1941
      %v2039 = vunpack.c.l.b16 %v1942
      %v2040 = vunpack.c.l.b16 %v1943
      %v2041 = vunpack.c.l.b16 %v1944
      %v2042 = vunpack.c.l.b16 %v1945
      %v2043 = vpack.c.b16 %v2039, %v2038
      %v2044 = vpack.c.b16 %v2041, %v2040
      %v2045 = vpack.c.b16 %v2042, %v2042
      %vm2048 = vcmask 293888
      %v2050 = vsel %vm2048, %v2017, 0
      %v2053 = vsel %vm2048, %v2018, 0
      %v2056 = vsel %vm2048, %v2019, 0
      %v2059 = vsel %vm2048, %v2020, 0
      %v2062 = vsel %vm2048, %v2021, 0
      %v2065 = vsel %vm2048, %v2022, 0
      %v2068 = vsel %vm2048, %v2023, 0
      %v2071 = vsel %vm2048, %v2024, 0
      %v2074 = vsel %vm2048, %v2025, 0
      %v2077 = vsel %vm2048, %v2026, 0
      %v2080 = vsel %vm2048, %v2027, 0
      %v2083 = vsel %vm2048, %v2028, 0
      %v2086 = vsel %vm2048, %v2029, 0
      %v2089 = vsel %vm2048, %v2030, 0
      %v2092 = vsel %vm2048, %v2031, 0
      %v2095 = vsel %vm2048, %v2032, 0
      %vm2097 = vcmask 1041408
      %v2099 = vsel %vm2097, %v2045, 0
      %2101 = vmatprep.subr.bf16.mxu0 0
      %2102 = vmatpush1.bf16.msra.mxu0 0
      %2103 = vmatprep.subr.bf16.mxu0 0
      %2104 = vmatpush1.bf16.msra.mxu0 0
      %2105 = vmatprep.subr.bf16.mxu0 0
      %2106 = vmatpush1.bf16.msra.mxu0 0
      %2107 = vmatprep.subr.bf16.mxu0 0
      %2108 = vmatpush1.bf16.msra.mxu0 0
      %2109 = vmatprep.subr.bf16.mxu0 0
      %2110 = vmatpush1.bf16.msra.mxu0 0
      %2111 = vmatprep.subr.bf16.mxu0 0
      %2112 = vmatpush1.bf16.msra.mxu0 %v2099
      %2113 = vmatprep.subr.bf16.mxu0 0
      %2114 = vmatpush1.bf16.msra.mxu0 %v2044
      %2115 = vmatprep.subr.bf16.mxu0 0
      %2116 = vmatpush1.bf16.msra.mxu0 %v2043
      %2117 = vmatprep.subr.bf16.mxu0 0
      %2118 = vmatpush2.bf16.msra.mxu0 0
      %2119 = vmatprep.subr.bf16.mxu0 0
      %2120 = vmatpush2.bf16.msra.mxu0 0
      %2121 = vmatprep.subr.bf16.mxu0 0
      %2122 = vmatpush2.bf16.msra.mxu0 0
      %2123 = vmatprep.subr.bf16.mxu0 0
      %2124 = vmatpush2.bf16.msra.mxu0 0
      %2125 = vmatprep.subr.bf16.mxu0 0
      %2126 = vmatpush2.bf16.msra.mxu0 0
      %2127 = vmatprep.subr.bf16.mxu0 0
      %2128 = vmatpush2.bf16.msra.mxu0 0
      %2129 = vmatprep.subr.bf16.mxu0 0
      %2130 = vmatpush2.bf16.msra.mxu0 0
      %2131 = vmatprep.subr.bf16.mxu0 0
      %2132 = vmatpush2.bf16.msra.mxu0 0
      %2133 = vmatprep.mubr.bf16.mxu0 0
      %2134 = vmatmul.mubr.bf16.gmra.mxu0 %v2050
      %v2135 = vpop.f32.mrf.mxu0
      %v2136 = vadd.f32 %v1951, %v2135
      %v2137 = vpop.f32.mrf.mxu0
      %v2138 = vpop.f32.mrf.mxu0
      %v2139 = vadd.f32 %v1951, %v2138
      %v2140 = vpop.f32.mrf.mxu0
      %2141 = vmatprep.mubr.bf16.mxu0 0
      %2142 = vmatmul.mubr.bf16.gmra.mxu0 %v2053
      %v2143 = vpop.f32.mrf.mxu0
      %v2144 = vadd.f32 %v1951, %v2143
      %v2145 = vpop.f32.mrf.mxu0
      %v2146 = vpop.f32.mrf.mxu0
      %v2147 = vadd.f32 %v1951, %v2146
      %v2148 = vpop.f32.mrf.mxu0
      %2149 = vmatprep.mubr.bf16.mxu0 0
      %2150 = vmatmul.mubr.bf16.gmra.mxu0 %v2056
      %v2151 = vpop.f32.mrf.mxu0
      %v2152 = vadd.f32 %v1951, %v2151
      %v2153 = vpop.f32.mrf.mxu0
      %v2154 = vpop.f32.mrf.mxu0
      %v2155 = vadd.f32 %v1951, %v2154
      %v2156 = vpop.f32.mrf.mxu0
      %2157 = vmatprep.mubr.bf16.mxu0 0
      %2158 = vmatmul.mubr.bf16.gmra.mxu0 %v2059
      %v2159 = vpop.f32.mrf.mxu0
      %v2160 = vadd.f32 %v1951, %v2159
      %v2161 = vpop.f32.mrf.mxu0
      %v2162 = vpop.f32.mrf.mxu0
      %v2163 = vadd.f32 %v1951, %v2162
      %v2164 = vpop.f32.mrf.mxu0
      %2165 = vmatprep.mubr.bf16.mxu0 0
      %2166 = vmatmul.mubr.bf16.gmra.mxu0 %v2062
      %v2167 = vpop.f32.mrf.mxu0
      %v2168 = vadd.f32 %v1951, %v2167
      %v2169 = vpop.f32.mrf.mxu0
      %v2170 = vpop.f32.mrf.mxu0
      %v2171 = vadd.f32 %v1951, %v2170
      %v2172 = vpop.f32.mrf.mxu0
      %2173 = vmatprep.mubr.bf16.mxu0 0
      %2174 = vmatmul.mubr.bf16.gmra.mxu0 %v2065
      %v2175 = vpop.f32.mrf.mxu0
      %v2176 = vadd.f32 %v1951, %v2175
      %v2177 = vpop.f32.mrf.mxu0
      %v2178 = vpop.f32.mrf.mxu0
      %v2179 = vadd.f32 %v1951, %v2178
      %v2180 = vpop.f32.mrf.mxu0
      %2181 = vmatprep.mubr.bf16.mxu0 0
      %2182 = vmatmul.mubr.bf16.gmra.mxu0 %v2068
      %v2183 = vpop.f32.mrf.mxu0
      %v2184 = vadd.f32 %v1951, %v2183
      %v2185 = vpop.f32.mrf.mxu0
      %v2186 = vpop.f32.mrf.mxu0
      %v2187 = vadd.f32 %v1951, %v2186
      %v2188 = vpop.f32.mrf.mxu0
      %2189 = vmatprep.mubr.bf16.mxu0 0
      %2190 = vmatmul.mubr.bf16.gmra.mxu0 %v2071
      %v2191 = vpop.f32.mrf.mxu0
      %v2192 = vadd.f32 %v1951, %v2191
      %v2193 = vpop.f32.mrf.mxu0
      %v2194 = vpop.f32.mrf.mxu0
      %v2195 = vadd.f32 %v1951, %v2194
      %v2196 = vpop.f32.mrf.mxu0
      %2197 = vmatprep.mubr.bf16.mxu0 0
      %2198 = vmatmul.mubr.bf16.gmra.mxu0 %v2074
      %v2199 = vpop.f32.mrf.mxu0
      %v2200 = vadd.f32 %v1951, %v2199
      %v2201 = vpop.f32.mrf.mxu0
      %v2202 = vpop.f32.mrf.mxu0
      %v2203 = vadd.f32 %v1951, %v2202
      %v2204 = vpop.f32.mrf.mxu0
      %2205 = vmatprep.mubr.bf16.mxu0 0
      %2206 = vmatmul.mubr.bf16.gmra.mxu0 %v2077
      %v2207 = vpop.f32.mrf.mxu0
      %v2208 = vadd.f32 %v1951, %v2207
      %v2209 = vpop.f32.mrf.mxu0
      %v2210 = vpop.f32.mrf.mxu0
      %v2211 = vadd.f32 %v1951, %v2210
      %v2212 = vpop.f32.mrf.mxu0
      %2213 = vmatprep.mubr.bf16.mxu0 0
      %2214 = vmatmul.mubr.bf16.gmra.mxu0 %v2080
      %v2215 = vpop.f32.mrf.mxu0
      %v2216 = vadd.f32 %v1951, %v2215
      %v2217 = vpop.f32.mrf.mxu0
      %v2218 = vpop.f32.mrf.mxu0
      %v2219 = vadd.f32 %v1951, %v2218
      %v2220 = vpop.f32.mrf.mxu0
      %2221 = vmatprep.mubr.bf16.mxu0 0
      %2222 = vmatmul.mubr.bf16.gmra.mxu0 %v2083
      %v2223 = vpop.f32.mrf.mxu0
      %v2224 = vadd.f32 %v1951, %v2223
      %v2225 = vpop.f32.mrf.mxu0
      %v2226 = vpop.f32.mrf.mxu0
      %v2227 = vadd.f32 %v1951, %v2226
      %v2228 = vpop.f32.mrf.mxu0
      %2229 = vmatprep.mubr.bf16.mxu0 0
      %2230 = vmatmul.mubr.bf16.gmra.mxu0 %v2086
      %v2231 = vpop.f32.mrf.mxu0
      %v2232 = vadd.f32 %v1951, %v2231
      %v2233 = vpop.f32.mrf.mxu0
      %v2234 = vpop.f32.mrf.mxu0
      %v2235 = vadd.f32 %v1951, %v2234
      %v2236 = vpop.f32.mrf.mxu0
      %2237 = vmatprep.mubr.bf16.mxu0 0
      %2238 = vmatmul.mubr.bf16.gmra.mxu0 %v2089
      %v2239 = vpop.f32.mrf.mxu0
      %v2240 = vadd.f32 %v1951, %v2239
      %v2241 = vpop.f32.mrf.mxu0
      %v2242 = vpop.f32.mrf.mxu0
      %v2243 = vadd.f32 %v1951, %v2242
      %v2244 = vpop.f32.mrf.mxu0
      %2245 = vmatprep.mubr.bf16.mxu0 0
      %2246 = vmatmul.mubr.bf16.gmra.mxu0 %v2092
      %v2247 = vpop.f32.mrf.mxu0
      %v2248 = vadd.f32 %v1951, %v2247
      %v2249 = vpop.f32.mrf.mxu0
      %v2250 = vpop.f32.mrf.mxu0
      %v2251 = vadd.f32 %v1951, %v2250
      %v2252 = vpop.f32.mrf.mxu0
      %2253 = vmatprep.mubr.bf16.mxu0 0
      %2254 = vmatmul.mubr.bf16.gmra.mxu0 %v2095
      %v2255 = vpop.f32.mrf.mxu0
      %v2256 = vadd.f32 %v1951, %v2255
      %v2257 = vpop.f32.mrf.mxu0
      %v2258 = vpop.f32.mrf.mxu0
      %v2259 = vadd.f32 %v1951, %v2258
      %v2260 = vpop.f32.mrf.mxu0
      %2261 = vdwg.mxu0
      %v2262 = vmul.f32 %v2136, 0.5
      %v2263 = vmul.f32 %v2139, 0.5
      %v2264 = vmul.f32 %v2144, 0.5
      %v2265 = vmul.f32 %v2147, 0.5
      %v2266 = vmul.f32 %v2152, 0.5
      %v2267 = vmul.f32 %v2155, 0.5
      %v2268 = vmul.f32 %v2160, 0.5
      %v2269 = vmul.f32 %v2163, 0.5
      %v2270 = vmul.f32 %v2168, 0.5
      %v2271 = vmul.f32 %v2171, 0.5
      %v2272 = vmul.f32 %v2176, 0.5
      %v2273 = vmul.f32 %v2179, 0.5
      %v2274 = vmul.f32 %v2184, 0.5
      %v2275 = vmul.f32 %v2187, 0.5
      %v2276 = vmul.f32 %v2192, 0.5
      %v2277 = vmul.f32 %v2195, 0.5
      %v2278 = vmul.f32 %v2200, 0.5
      %v2279 = vmul.f32 %v2203, 0.5
      %v2280 = vmul.f32 %v2208, 0.5
      %v2281 = vmul.f32 %v2211, 0.5
      %v2282 = vmul.f32 %v2216, 0.5
      %v2283 = vmul.f32 %v2219, 0.5
      %v2284 = vmul.f32 %v2224, 0.5
      %v2285 = vmul.f32 %v2227, 0.5
      %v2286 = vmul.f32 %v2232, 0.5
      %v2287 = vmul.f32 %v2235, 0.5
      %v2288 = vmul.f32 %v2240, 0.5
      %v2289 = vmul.f32 %v2243, 0.5
      %v2290 = vmul.f32 %v2248, 0.5
      %v2291 = vmul.f32 %v2251, 0.5
      %v2292 = vmul.f32 %v2256, 0.5
      %v2293 = vmul.f32 %v2259, 0.5
      %v2294 = vmul.f32 %v2136, 0.70710677
      %v2295 = vmul.f32 %v2139, 0.70710677
      %v2296 = vmul.f32 %v2144, 0.70710677
      %v2297 = vmul.f32 %v2147, 0.70710677
      %v2298 = vmul.f32 %v2152, 0.70710677
      %v2299 = vmul.f32 %v2155, 0.70710677
      %v2300 = vmul.f32 %v2160, 0.70710677
      %v2301 = vmul.f32 %v2163, 0.70710677
      %v2302 = vmul.f32 %v2168, 0.70710677
      %v2303 = vmul.f32 %v2171, 0.70710677
      %v2304 = vmul.f32 %v2176, 0.70710677
      %v2305 = vmul.f32 %v2179, 0.70710677
      %v2306 = vmul.f32 %v2184, 0.70710677
      %v2307 = vmul.f32 %v2187, 0.70710677
      %v2308 = vmul.f32 %v2192, 0.70710677
      %v2309 = vmul.f32 %v2195, 0.70710677
      %v2310 = vmul.f32 %v2200, 0.70710677
      %v2311 = vmul.f32 %v2203, 0.70710677
      %v2312 = vmul.f32 %v2208, 0.70710677
      %v2313 = vmul.f32 %v2211, 0.70710677
      %v2314 = vmul.f32 %v2216, 0.70710677
      %v2315 = vmul.f32 %v2219, 0.70710677
      %v2316 = vmul.f32 %v2224, 0.70710677
      %v2317 = vmul.f32 %v2227, 0.70710677
      %v2318 = vmul.f32 %v2232, 0.70710677
      %v2319 = vmul.f32 %v2235, 0.70710677
      %v2320 = vmul.f32 %v2240, 0.70710677
      %v2321 = vmul.f32 %v2243, 0.70710677
      %v2322 = vmul.f32 %v2248, 0.70710677
      %v2323 = vmul.f32 %v2251, 0.70710677
      %v2324 = vmul.f32 %v2256, 0.70710677
      %v2325 = vmul.f32 %v2259, 0.70710677
      %v2326 = verf.f32.pop %v2294
      %v2327 = verf.f32.pop %v2295
      %v2328 = verf.f32.pop %v2296
      %v2329 = verf.f32.pop %v2297
      %v2330 = verf.f32.pop %v2298
      %v2331 = verf.f32.pop %v2299
      %v2332 = verf.f32.pop %v2300
      %v2333 = verf.f32.pop %v2301
      %v2334 = verf.f32.pop %v2302
      %v2335 = verf.f32.pop %v2303
      %v2336 = verf.f32.pop %v2304
      %v2337 = verf.f32.pop %v2305
      %v2338 = verf.f32.pop %v2306
      %v2339 = verf.f32.pop %v2307
      %v2340 = verf.f32.pop %v2308
      %v2341 = verf.f32.pop %v2309
      %v2342 = verf.f32.pop %v2310
      %v2343 = verf.f32.pop %v2311
      %v2344 = verf.f32.pop %v2312
      %v2345 = verf.f32.pop %v2313
      %v2346 = verf.f32.pop %v2314
      %v2347 = verf.f32.pop %v2315
      %v2348 = verf.f32.pop %v2316
      %v2349 = verf.f32.pop %v2317
      %v2350 = verf.f32.pop %v2318
      %v2351 = verf.f32.pop %v2319
      %v2352 = verf.f32.pop %v2320
      %v2353 = verf.f32.pop %v2321
      %v2354 = verf.f32.pop %v2322
      %v2355 = verf.f32.pop %v2323
      %v2356 = verf.f32.pop %v2324
      %v2357 = verf.f32.pop %v2325
      %v2358 = vadd.f32 %v2326, 1.0
      %v2359 = vadd.f32 %v2327, 1.0
      %v2360 = vadd.f32 %v2328, 1.0
      %v2361 = vadd.f32 %v2329, 1.0
      %v2362 = vadd.f32 %v2330, 1.0
      %v2363 = vadd.f32 %v2331, 1.0
      %v2364 = vadd.f32 %v2332, 1.0
      %v2365 = vadd.f32 %v2333, 1.0
      %v2366 = vadd.f32 %v2334, 1.0
      %v2367 = vadd.f32 %v2335, 1.0
      %v2368 = vadd.f32 %v2336, 1.0
      %v2369 = vadd.f32 %v2337, 1.0
      %v2370 = vadd.f32 %v2338, 1.0
      %v2371 = vadd.f32 %v2339, 1.0
      %v2372 = vadd.f32 %v2340, 1.0
      %v2373 = vadd.f32 %v2341, 1.0
      %v2374 = vadd.f32 %v2342, 1.0
      %v2375 = vadd.f32 %v2343, 1.0
      %v2376 = vadd.f32 %v2344, 1.0
      %v2377 = vadd.f32 %v2345, 1.0
      %v2378 = vadd.f32 %v2346, 1.0
      %v2379 = vadd.f32 %v2347, 1.0
      %v2380 = vadd.f32 %v2348, 1.0
      %v2381 = vadd.f32 %v2349, 1.0
      %v2382 = vadd.f32 %v2350, 1.0
      %v2383 = vadd.f32 %v2351, 1.0
      %v2384 = vadd.f32 %v2352, 1.0
      %v2385 = vadd.f32 %v2353, 1.0
      %v2386 = vadd.f32 %v2354, 1.0
      %v2387 = vadd.f32 %v2355, 1.0
      %v2388 = vadd.f32 %v2356, 1.0
      %v2389 = vadd.f32 %v2357, 1.0
      %v2390 = vmul.f32 %v2262, %v2358
      %v2391 = vmul.f32 %v2263, %v2359
      %v2392 = vmul.f32 %v2264, %v2360
      %v2393 = vmul.f32 %v2265, %v2361
      %v2394 = vmul.f32 %v2266, %v2362
      %v2395 = vmul.f32 %v2267, %v2363
      %v2396 = vmul.f32 %v2268, %v2364
      %v2397 = vmul.f32 %v2269, %v2365
      %v2398 = vmul.f32 %v2270, %v2366
      %v2399 = vmul.f32 %v2271, %v2367
      %v2400 = vmul.f32 %v2272, %v2368
      %v2401 = vmul.f32 %v2273, %v2369
      %v2402 = vmul.f32 %v2274, %v2370
      %v2403 = vmul.f32 %v2275, %v2371
      %v2404 = vmul.f32 %v2276, %v2372
      %v2405 = vmul.f32 %v2277, %v2373
      %v2406 = vmul.f32 %v2278, %v2374
      %v2407 = vmul.f32 %v2279, %v2375
      %v2408 = vmul.f32 %v2280, %v2376
      %v2409 = vmul.f32 %v2281, %v2377
      %v2410 = vmul.f32 %v2282, %v2378
      %v2411 = vmul.f32 %v2283, %v2379
      %v2412 = vmul.f32 %v2284, %v2380
      %v2413 = vmul.f32 %v2285, %v2381
      %v2414 = vmul.f32 %v2286, %v2382
      %v2415 = vmul.f32 %v2287, %v2383
      %v2416 = vmul.f32 %v2288, %v2384
      %v2417 = vmul.f32 %v2289, %v2385
      %v2418 = vmul.f32 %v2290, %v2386
      %v2419 = vmul.f32 %v2291, %v2387
      %v2420 = vmul.f32 %v2292, %v2388
      %v2421 = vmul.f32 %v2293, %v2389
      %vm2422 = vcmask 64512
      %2423 = vst.msk [vmem:[%s170] sm:$0xff] %vm2422, %v2390
      %2424 = vst.msk [vmem:[%s170 + $0x8] sm:$0xff] %vm2422, %v2391
      %2425 = vst.msk [vmem:[%s170 + $0x10] sm:$0xff] %vm2422, %v2392
      %2426 = vst.msk [vmem:[%s170 + $0x18] sm:$0xff] %vm2422, %v2393
      %2427 = vst.msk [vmem:[%s170 + $0x20] sm:$0xff] %vm2422, %v2394
      %2428 = vst.msk [vmem:[%s170 + $0x28] sm:$0xff] %vm2422, %v2395
      %2429 = vst.msk [vmem:[%s170 + $0x30] sm:$0xff] %vm2422, %v2396
      %2430 = vst.msk [vmem:[%s170 + $0x38] sm:$0xff] %vm2422, %v2397
      %2431 = vst.msk [vmem:[%s170 + $0x40] sm:$0xff] %vm2422, %v2398
      %2432 = vst.msk [vmem:[%s170 + $0x48] sm:$0xff] %vm2422, %v2399
      %2433 = vst.msk [vmem:[%s170 + $0x50] sm:$0xff] %vm2422, %v2400
      %2434 = vst.msk [vmem:[%s170 + $0x58] sm:$0xff] %vm2422, %v2401
      %2435 = vst.msk [vmem:[%s170 + $0x60] sm:$0xff] %vm2422, %v2402
      %2436 = vst.msk [vmem:[%s170 + $0x68] sm:$0xff] %vm2422, %v2403
      %2437 = vst.msk [vmem:[%s170 + $0x70] sm:$0xff] %vm2422, %v2404
      %2438 = vst.msk [vmem:[%s170 + $0x78] sm:$0xff] %vm2422, %v2405
      %2439 = vst.msk [vmem:[%s170 + $0x80] sm:$0xff] %vm2422, %v2406
      %2440 = vst.msk [vmem:[%s170 + $0x88] sm:$0xff] %vm2422, %v2407
      %2441 = vst.msk [vmem:[%s170 + $0x90] sm:$0xff] %vm2422, %v2408
      %2442 = vst.msk [vmem:[%s170 + $0x98] sm:$0xff] %vm2422, %v2409
      %2443 = vst.msk [vmem:[%s170 + $0xa0] sm:$0xff] %vm2422, %v2410
      %2444 = vst.msk [vmem:[%s170 + $0xa8] sm:$0xff] %vm2422, %v2411
      %2445 = vst.msk [vmem:[%s170 + $0xb0] sm:$0xff] %vm2422, %v2412
      %2446 = vst.msk [vmem:[%s170 + $0xb8] sm:$0xff] %vm2422, %v2413
      %2447 = vst.msk [vmem:[%s170 + $0xc0] sm:$0xff] %vm2422, %v2414
      %2448 = vst.msk [vmem:[%s170 + $0xc8] sm:$0xff] %vm2422, %v2415
      %2449 = vst.msk [vmem:[%s170 + $0xd0] sm:$0xff] %vm2422, %v2416
      %2450 = vst.msk [vmem:[%s170 + $0xd8] sm:$0xff] %vm2422, %v2417
      %2451 = vst.msk [vmem:[%s170 + $0xe0] sm:$0xff] %vm2422, %v2418
      %2452 = vst.msk [vmem:[%s170 + $0xe8] sm:$0xff] %vm2422, %v2419
      %2453 = vst.msk [vmem:[%s170 + $0xf0] sm:$0xff] %vm2422, %v2420
      %2454 = vst.msk [vmem:[%s170 + $0xf8] sm:$0xff] %vm2422, %v2421
      %p2455 = scmp.lt.s32.totalorder %s14, 1
      %s2456 = scalar_select %p2455, %s14, 1
      %s2457 = smul.addr %s2456, 32
      %s2458 = smul.addr %s2457, 8
      %s2459 = scalar_lea.vmem %s3, %s2458
      // Predicated region
      $region33: #{tpu_custom_call.1} parent=31 // pred_check
        %p2460 = pneg %p100
      $region34: #{tpu_custom_call.1} parent=31 // pred_check_branch
        %2462 = sbr.rel (%p2460) target = $region36
      $region35: #{tpu_custom_call.1} parent=31 // pred_region
        _
      $region36: #{tpu_custom_call.1} parent=31 // pred_fallthru
        _
    $region32: #{tpu_custom_call.1} parent=5 // pred_fallthru
      _
    %p2463 = scmp.le.s32.totalorder 2, %s9
    // Predicated region
    $region37: #{tpu_custom_call.1} parent=5 // pred_check
      %p2464 = pneg %p2463
    $region38: #{tpu_custom_call.1} parent=5 // pred_check_branch
      %2466 = sbr.rel (%p2464) target = $region40
    $region39: #{tpu_custom_call.1} parent=5 // pred_region
      %s2467 = ssub.s32 %s9, 2
      // Predicated region
      $region41: #{tpu_custom_call.1} parent=39 // pred_check
        %p2468 = pneg %p106
      $region42: #{tpu_custom_call.1} parent=39 // pred_check_branch
        %2470 = sbr.rel (%p2468) target = $region44
      $region43: #{tpu_custom_call.1} parent=39 // pred_region
        %p2471 = scmp.lt.s32.totalorder %s15, 1
        %s2472 = scalar_select %p2471, %s15, 1
        %s2473 = smul.addr %s2472, 32
        %s2474 = smul.addr %s2473, 8
        %s2475 = scalar_lea.vmem %s3, %s2474
      $region44: #{tpu_custom_call.1} parent=39 // pred_fallthru
        _
    $region40: #{tpu_custom_call.1} parent=5 // pred_fallthru
      _
  $region6: #{tpu_custom_call.1} parent=0 // loop_footer
    %s13 = sadd.s32 1, %s9
  $region7: #{tpu_custom_call.1} parent=0 // loop_footer_branch
    %8 = sbr.rel target = $region3
  $region8: #{tpu_custom_call.1} parent=0 // loop_exit
    _

</llo_original>
